<compile_context>
chip_gen: v5e
topology: v5e:2x2
jax: 0.10.0
libtpu: 0.0.40
codegen_flags: <defaults>
</compile_context>

<pallas_src>
import numpy as np
import jax
import jax.numpy as jnp
from jax.experimental import pallas as pl
from jax.experimental.pallas import tpu as pltpu

KERNEL_SIZE = 10
CONV_OUT = 150
NUM_CLASSES = 3
OUT_PAD = 128   # lane-dense padded output width (>= NUM_CLASSES)
TILE_B = 8      # batch elements per grid program (fills 8 sublanes)


# --------------------------- fused forward kernel ---------------------------
def make_bda_kernel(T, H, num_layers, tile_b):
    """Kernel factory; one grid program handles tile_b sequences."""
    H4 = 4 * H

    def kernel(*refs):
        # ref layout:
        #   x, band, cb4, wx0, bx0, whh_0,
        #   [wih_l, bx_l, whh_l  for l in 1..num_layers-1],
        #   w3p, b3p, out, hseq_scratch
        x_ref, band_ref, cb_ref, wx0_ref, bx0_ref = refs[:5]
        idx = 5
        whh_refs = [refs[idx]]
        idx += 1
        wih_refs, bx_refs = [], []
        for _ in range(num_layers - 1):
            wih_refs.append(refs[idx])
            bx_refs.append(refs[idx + 1])
            whh_refs.append(refs[idx + 2])
            idx += 3
        w3_ref = refs[idx]
        b3_ref = refs[idx + 1]
        out_ref = refs[idx + 2]
        hseq_ref = refs[idx + 3]          # VMEM scratch (T*tile_b, H)

        # ---- conv1d + relu + maxpool(2) + linear0 + layer-0 input proj ----
        # rows are ordered r = t*tile_b + b  (time-major within the tile)
        x = x_ref[...].astype(jnp.bfloat16)                     # (T*tb, dim_in)
        phases = (jnp.dot(x, band_ref[...],
                          preferred_element_type=jnp.float32) + cb_ref[...])
        half = phases.shape[-1] // 2                            # 2P
        # relu then pool(2) == relu(max(even_phase, odd_phase))
        pooled = jnp.maximum(jnp.maximum(phases[:, :half], phases[:, half:]),
                             0.0)                               # (T*tb, 2P)
        # fused Linear0 + layer-0 W_ih projection (time-independent, hoisted)
        gx0 = (jnp.dot(pooled.astype(jnp.bfloat16), wx0_ref[...],
                       preferred_element_type=jnp.float32)
               + bx0_ref[...])                                  # (T*tb, 4H)

        # Hoist all recurrence weight loads / bias broadcasts out of the
        # unrolled time loop (JAX does not CSE broadcast_in_dim).
        whh = [r[...] for r in whh_refs]                        # bf16 (H, 4H)
        wih = [r[...] for r in wih_refs]                        # bf16 (H, 4H)
        bxl = [jnp.broadcast_to(r[...], (tile_b, H4)) for r in bx_refs]

        h = [jnp.zeros((tile_b, H), jnp.float32) for _ in range(num_layers)]
        c = [jnp.zeros((tile_b, H), jnp.float32) for _ in range(num_layers)]

        # Wavefronted recurrence: layer l step t follows layer l-1 step t, so
        # layer l step t and layer l-1 step t+1 are independent chains the
        # scheduler can interleave.  T is small -> static unroll.
        for t in range(T):
            r0 = t * tile_b
            for l in range(num_layers):
                if l == 0:
                    g = gx0[r0:r0 + tile_b, :]                  # (tb, 4H)
                else:
                    g = (jnp.dot(h[l - 1].astype(jnp.bfloat16), wih[l - 1],
                                 preferred_element_type=jnp.float32)
                         + bxl[l - 1])
                g = g + jnp.dot(h[l].astype(jnp.bfloat16), whh[l],
                                preferred_element_type=jnp.float32)
                sig = jax.nn.sigmoid(g[:, :3 * H])              # i | f | o
                g_act = jnp.tanh(g[:, 3 * H:])                  # g gate
                i_g = sig[:, :H]
                f_g = sig[:, H:2 * H]
                o_g = sig[:, 2 * H:3 * H]
                c[l] = f_g * c[l] + i_g * g_act
                h[l] = o_g * jnp.tanh(c[l])
            # plain aligned row write into the scratch (no concatenate)
            hseq_ref[r0:r0 + tile_b, :] = h[num_layers - 1]

        # ---- head: Linear(H -> 3), one matmul, lane-dense padded store ----
        hs = hseq_ref[...]                                      # (T*tb, H)
        out_ref[...] = (jnp.dot(hs.astype(jnp.bfloat16), w3_ref[...],
                                preferred_element_type=jnp.float32)
                        + b3_ref[...])                          # (T*tb, 128)

    return kernel


# ------------------- parameter setup (deterministic, synthetic) -------------
def init_params(key, dim_in, num_cells, num_layers):
    H = num_cells
    ks = jax.random.split(key, 8 + num_layers)

    def u(k, shape, scale):
        return jax.random.uniform(k, shape, jnp.float32, -scale, scale)

    p = {}
    p["conv_w"] = u(ks[0], (2, 1, KERNEL_SIZE), 1.0 / np.sqrt(KERNEL_SIZE))
    p["conv_b"] = u(ks[1], (2,), 1.0 / np.sqrt(KERNEL_SIZE))
    flat = 2 * ((dim_in - KERNEL_SIZE + 1) // 2)
    p["w0"] = u(ks[2], (CONV_OUT, flat), 1.0 / np.sqrt(flat))
    p["b0"] = u(ks[3], (CONV_OUT,), 1.0 / np.sqrt(flat))
    p["lstm"] = []
    for layer in range(num_layers):
        din = CONV_OUT if layer == 0 else H
        lk = jax.random.split(ks[4 + layer], 4)
        s = 1.0 / np.sqrt(H)
        p["lstm"].append({
            "w_ih": u(lk[0], (4 * H, din), s),
            "w_hh": u(lk[1], (4 * H, H), s),
            "b_ih": u(lk[2], (4 * H,), s),
            "b_hh": u(lk[3], (4 * H,), s),
        })
    p["w3"] = u(ks[4 + num_layers], (NUM_CLASSES, H), 1.0 / np.sqrt(H))
    p["b3"] = u(ks[5 + num_layers], (NUM_CLASSES,), 1.0 / np.sqrt(H))
    return p


def prepare_kernel_params(p, dim_in, num_cells, num_layers):
    """Rearrange PyTorch-layout params into fused, kernel-friendly layouts.

    Matmul operands are stored bf16 (native MXU path on v6e/v7x, also valid
    on v5e); biases stay f32 (added in f32 after the f32-accumulated dot).
    """
    H = num_cells
    L = dim_in - KERNEL_SIZE + 1
    P = L // 2
    order = (0, 1, 3, 2)  # PyTorch i,f,g,o -> kernel i,f,o,g

    # Conv1d folded into a single (dim_in, 4P) band matrix: [even | odd].
    cw = np.asarray(p["conv_w"])[:, 0, :]            # (2, K)
    cb = np.asarray(p["conv_b"])                     # (2,)
    band = np.zeros((dim_in, 4 * P), np.float32)
    for c in range(2):
        for pp in range(P):
            for k in range(KERNEL_SIZE):
                band[2 * pp + k, c * P + pp] += cw[c, k]               # even
                band[2 * pp + 1 + k, 2 * P + c * P + pp] += cw[c, k]   # odd
    cbe = np.repeat(cb, P).astype(np.float32)        # (2P,)
    cb4 = np.concatenate([cbe, cbe]).reshape(1, 4 * P)

    def reorder_cols(w):
        # columns ordered in gate blocks i,f,g,o -> reorder to i,f,o,g
        return np.concatenate([w[..., g * H:(g + 1) * H] for g in order],
                              axis=-1)

    lstm_np = []
    for lp in p["lstm"]:
        w_ih = np.asarray(lp["w_ih"])                # (4H, Din)
        w_hh = np.asarray(lp["w_hh"])                # (4H, H)
        b = np.asarray(lp["b_ih"]) + np.asarray(lp["b_hh"])    # (4H,)
        lstm_np.append((reorder_cols(w_ih.T),        # (Din, 4H)
                        reorder_cols(w_hh.T),        # (H, 4H)
                        reorder_cols(b.reshape(1, 4 * H))))     # (1, 4H)

    # Fuse Linear0 with layer-0 input projection.
    w0 = np.asarray(p["w0"])                         # (150, 2P)
    b0 = np.asarray(p["b0"])                         # (150,)
    wih0, whh0, b0l = lstm_np[0]
    wx0 = (w0.T @ wih0).astype(np.float32)           # (2P, 4H)
    bx0 = (b0.reshape(1, -1) @ wih0 + b0l).astype(np.float32)   # (1, 4H)

    # Head, zero-padded to 128 lanes for lane-dense stores.
    w3 = np.asarray(p["w3"])                         # (3, H)
    b3 = np.asarray(p["b3"])                         # (3,)
    w3p = np.zeros((H, OUT_PAD), np.float32)
    w3p[:, :NUM_CLASSES] = w3.T
    b3p = np.zeros((1, OUT_PAD), np.float32)
    b3p[0, :NUM_CLASSES] = b3

    bf16 = jnp.bfloat16
    args = [jnp.asarray(band, bf16), jnp.asarray(cb4),
            jnp.asarray(wx0, bf16), jnp.asarray(bx0),
            jnp.asarray(whh0, bf16)]
    for l in range(1, num_layers):
        wih_l, whh_l, b_l = lstm_np[l]
        args += [jnp.asarray(wih_l, bf16), jnp.asarray(b_l),
                 jnp.asarray(whh_l, bf16)]
    args += [jnp.asarray(w3p, bf16), jnp.asarray(b3p)]
    return args


# ------------------------------- forward wrapper -----------------------------
def _const_spec(arr):
    # Constants: block == full array, fixed block index -> not re-DMA'd across
    # grid steps.  (pl.Buffered(1) single-buffering intentionally skipped; the
    # whole weight set is < 100 KiB so the second buffer is negligible.)
    nd = arr.ndim
    return pl.BlockSpec(arr.shape, lambda i, _nd=nd: (0,) * _nd)


def bda_forward(data, kargs, num_cells, num_layers, tile_b=TILE_B):
    B, T, dim_in = data.shape
    H = num_cells
    ntiles = -(-B // tile_b)
    B_pad = ntiles * tile_b

    x = data.astype(jnp.float32)
    if B_pad != B:
        x = jnp.pad(x, ((0, B_pad - B), (0, 0), (0, 0)))
    # Lay out rows time-major within each batch tile:
    #   global row = ((tile * T + t) * tile_b + b_local)
    x2 = (x.reshape(ntiles, tile_b, T, dim_in)
           .transpose(0, 2, 1, 3)
           .reshape(ntiles * T * tile_b, dim_in))

    kernel = make_bda_kernel(T, H, num_layers, tile_b)
    rows = T * tile_b

    in_specs = [pl.BlockSpec((rows, dim_in), lambda i: (i, 0))]
    in_specs += [_const_spec(a) for a in kargs]
    out_spec = pl.BlockSpec((rows, OUT_PAD), lambda i: (i, 0))

    # Advisory cost estimate for XLA scheduling.
    rows_total = ntiles * rows
    P4 = kargs[0].shape[1]          # 4P
    H4 = 4 * H
    flops = 2 * rows_total * (dim_in * P4 + (P4 // 2) * H4
                              + (2 * num_layers - 1) * H * H4
                              + H * OUT_PAD)
    transcendentals = rows_total * num_layers * 5 * H
    bytes_accessed = int(4 * x2.size
                         + sum(int(a.size) * a.dtype.itemsize for a in kargs)
                         + 4 * rows_total * OUT_PAD)

    out2 = pl.pallas_call(
        kernel,
        out_shape=jax.ShapeDtypeStruct((rows_total, OUT_PAD), jnp.float32),
        grid=(ntiles,),
        in_specs=in_specs,
        out_specs=out_spec,
        scratch_shapes=[pltpu.VMEM((rows, H), jnp.float32)],
        compiler_params=pltpu.CompilerParams(
            dimension_semantics=("parallel",),   # shards tiles across TCs (v7x)
            vmem_limit_bytes=32 * 1024 * 1024),
        cost_estimate=pl.CostEstimate(flops=flops,
                                      transcendentals=transcendentals,
                                      bytes_accessed=bytes_accessed),
    )(x2, *kargs)

    out = (out2.reshape(ntiles, T, tile_b, OUT_PAD)
               .transpose(0, 2, 1, 3)
               .reshape(B_pad, T, OUT_PAD))[:B, :, :NUM_CLASSES]
    return out.transpose(0, 2, 1)                 # (B, 3, T)


# ---------------- pure-JAX reference (mirrors PyTorch forward) ---------------
def reference_forward(data, p, num_cells):
    B, T, dim_in = data.shape
    H = num_cells
    N = B * T
    K = KERNEL_SIZE
    L = dim_in - K + 1
    P = L // 2

    x = data.reshape(N, dim_in)
    conv_w = p["conv_w"][:, 0, :]
    chans = []
    for c in range(2):
        acc = jnp.full((N, L), p["conv_b"][c])
        for k in range(K):
            acc = acc + x[:, k:k + L] * conv_w[c, k]
        chans.append(acc)
    y = jnp.maximum(jnp.stack(chans, axis=1), 0.0)           # (N, 2, L)
    y = y[:, :, :2 * P].reshape(N, 2, P, 2).max(axis=-1)     # max_pool1d(2)
    flat = y.reshape(N, 2 * P)
    feat = flat @ p["w0"].T + p["b0"]
    seq = feat.reshape(B, T, CONV_OUT)

    for lp in p["lstm"]:
        h = jnp.zeros((B, H), jnp.float32)
        c = jnp.zeros((B, H), jnp.float32)
        outs = []
        for t in range(T):
            gates = (seq[:, t, :] @ lp["w_ih"].T + h @ lp["w_hh"].T
                     + lp["b_ih"] + lp["b_hh"])
            i = jax.nn.sigmoid(gates[:, 0:H])
            f = jax.nn.sigmoid(gates[:, H:2 * H])
            g = jnp.tanh(gates[:, 2 * H:3 * H])
            o = jax.nn.sigmoid(gates[:, 3 * H:4 * H])
            c = f * c + i * g
            h = o * jnp.tanh(c)
            outs.append(h)
        seq = jnp.stack(outs, axis=1)
    out = seq @ p["w3"].T + p["b3"]                           # (B, T, 3)
    return out.transpose(0, 2, 1)                             # (B, 3, T)


if __name__ == "__main__":
    B, T = 16, 8         # B = 2 * TILE_B -> grid of 2 programs (both TCs on v7x)
    dim_in = 42          # conv out len = 33, pooled len P = 16, flat = 32
    num_cells = 32       # H = 32  ->  4H = 128 (full MXU lane width)
    num_layers = 2

    key = jax.random.PRNGKey(0)
    k_data, k_param = jax.random.split(key)
    data = jax.random.normal(k_data, (B, T, dim_in), dtype=jnp.float32)

    params = init_params(k_param, dim_in, num_cells, num_layers)
    kargs = prepare_kernel_params(params, dim_in, num_cells, num_layers)

    out = bda_forward(data, kargs, num_cells, num_layers)
    out = jax.block_until_ready(out)

    ref = reference_forward(data, params, num_cells)
    assert out.shape == (B, NUM_CLASSES, T), out.shape
    np.testing.assert_allclose(np.asarray(out), np.asarray(ref),
                               rtol=2e-2, atol=2e-2)
    print("KERNEL_OK")
</pallas_src>

<mosaic_0001>
module attributes {stable_mosaic.version = 11 : i64} {
  func.func @kernel(%arg0: i32, %arg1: memref<64x42xf32, #tpu.memory_space<vmem>>, %arg2: memref<42x64xbf16, #tpu.memory_space<vmem>>, %arg3: memref<1x64xf32, #tpu.memory_space<vmem>>, %arg4: memref<32x128xbf16, #tpu.memory_space<vmem>>, %arg5: memref<1x128xf32, #tpu.memory_space<vmem>>, %arg6: memref<32x128xbf16, #tpu.memory_space<vmem>>, %arg7: memref<32x128xbf16, #tpu.memory_space<vmem>>, %arg8: memref<1x128xf32, #tpu.memory_space<vmem>>, %arg9: memref<32x128xbf16, #tpu.memory_space<vmem>>, %arg10: memref<32x128xbf16, #tpu.memory_space<vmem>>, %arg11: memref<1x128xf32, #tpu.memory_space<vmem>>, %arg12: memref<64x128xf32, #tpu.memory_space<vmem>>, %arg13: memref<64x32xf32, #tpu.memory_space<vmem>>) attributes {dimension_semantics = [#tpu.dimension_semantics<parallel>], iteration_bounds = array<i64: 2>, scalar_prefetch = 0 : i64, scratch_operands = 1 : i64, tpu.core_type = #tpu.core_type<tc>, window_params = [{transform_indices = @transform_0, window_bounds = array<i64: 64, 42>}, {pipeline_mode = #tpu.pipeline_mode<synchronous>, transform_indices = @transform_1, window_bounds = array<i64: 42, 64>}, {pipeline_mode = #tpu.pipeline_mode<synchronous>, transform_indices = @transform_2, window_bounds = array<i64: 1, 64>}, {pipeline_mode = #tpu.pipeline_mode<synchronous>, transform_indices = @transform_3, window_bounds = array<i64: 32, 128>}, {pipeline_mode = #tpu.pipeline_mode<synchronous>, transform_indices = @transform_4, window_bounds = array<i64: 1, 128>}, {pipeline_mode = #tpu.pipeline_mode<synchronous>, transform_indices = @transform_5, window_bounds = array<i64: 32, 128>}, {pipeline_mode = #tpu.pipeline_mode<synchronous>, transform_indices = @transform_6, window_bounds = array<i64: 32, 128>}, {pipeline_mode = #tpu.pipeline_mode<synchronous>, transform_indices = @transform_7, window_bounds = array<i64: 1, 128>}, {pipeline_mode = #tpu.pipeline_mode<synchronous>, transform_indices = @transform_8, window_bounds = array<i64: 32, 128>}, {pipeline_mode = #tpu.pipeline_mode<synchronous>, transform_indices = @transform_9, window_bounds = array<i64: 32, 128>}, {pipeline_mode = #tpu.pipeline_mode<synchronous>, transform_indices = @transform_10, window_bounds = array<i64: 1, 128>}, {transform_indices = @transform_11, window_bounds = array<i64: 64, 128>}]} {
    %c0 = arith.constant 0 : index
    %c0_0 = arith.constant 0 : index
    %0 = vector.load %arg1[%c0, %c0_0] : memref<64x42xf32, #tpu.memory_space<vmem>>, vector<64x42xf32>
    %1 = arith.truncf %0 : vector<64x42xf32> to vector<64x42xbf16>
    %c0_1 = arith.constant 0 : index
    %c0_2 = arith.constant 0 : index
    %2 = vector.load %arg2[%c0_1, %c0_2] : memref<42x64xbf16, #tpu.memory_space<vmem>>, vector<42x64xbf16>
    %cst = arith.constant dense<0.000000e+00> : vector<64x64xf32>
    %3 = tpu.matmul %1, %2, %cst {dimension_numbers = #tpu.dot_dimension_numbers<[1], [0], [0], [1], [0, 0, 1, 1], [], []>} : vector<64x42xbf16>, vector<42x64xbf16>, vector<64x64xf32> -> vector<64x64xf32>
    %c0_3 = arith.constant 0 : index
    %c0_4 = arith.constant 0 : index
    %4 = vector.load %arg3[%c0_3, %c0_4] : memref<1x64xf32, #tpu.memory_space<vmem>>, vector<1x64xf32>
    %5 = vector.broadcast %4 : vector<1x64xf32> to vector<64x64xf32>
    %6 = arith.addf %3, %5 : vector<64x64xf32>
    %7 = vector.extract_strided_slice %6 {offsets = [0, 0], sizes = [64, 32], strides = [1, 1]} : vector<64x64xf32> to vector<64x32xf32>
    %8 = vector.extract_strided_slice %6 {offsets = [0, 32], sizes = [64, 32], strides = [1, 1]} : vector<64x64xf32> to vector<64x32xf32>
    %9 = arith.maximumf %7, %8 : vector<64x32xf32>
    %cst_5 = arith.constant 0.000000e+00 : f32
    %10 = vector.broadcast %cst_5 : f32 to vector<64x32xf32>
    %11 = arith.maximumf %9, %10 : vector<64x32xf32>
    %12 = arith.truncf %11 : vector<64x32xf32> to vector<64x32xbf16>
    %c0_6 = arith.constant 0 : index
    %c0_7 = arith.constant 0 : index
    %13 = vector.load %arg4[%c0_6, %c0_7] : memref<32x128xbf16, #tpu.memory_space<vmem>>, vector<32x128xbf16>
    %cst_8 = arith.constant dense<0.000000e+00> : vector<64x128xf32>
    %14 = tpu.matmul %12, %13, %cst_8 {dimension_numbers = #tpu.dot_dimension_numbers<[1], [0], [0], [1], [0, 0, 1, 1], [], []>} : vector<64x32xbf16>, vector<32x128xbf16>, vector<64x128xf32> -> vector<64x128xf32>
    %c0_9 = arith.constant 0 : index
    %c0_10 = arith.constant 0 : index
    %15 = vector.load %arg5[%c0_9, %c0_10] : memref<1x128xf32, #tpu.memory_space<vmem>>, vector<1x128xf32>
    %16 = vector.broadcast %15 : vector<1x128xf32> to vector<64x128xf32>
    %17 = arith.addf %14, %16 : vector<64x128xf32>
    %c0_11 = arith.constant 0 : index
    %c0_12 = arith.constant 0 : index
    %18 = vector.load %arg6[%c0_11, %c0_12] : memref<32x128xbf16, #tpu.memory_space<vmem>>, vector<32x128xbf16>
    %c0_13 = arith.constant 0 : index
    %c0_14 = arith.constant 0 : index
    %19 = vector.load %arg9[%c0_13, %c0_14] : memref<32x128xbf16, #tpu.memory_space<vmem>>, vector<32x128xbf16>
    %c0_15 = arith.constant 0 : index
    %c0_16 = arith.constant 0 : index
    %20 = vector.load %arg7[%c0_15, %c0_16] : memref<32x128xbf16, #tpu.memory_space<vmem>>, vector<32x128xbf16>
    %c0_17 = arith.constant 0 : index
    %c0_18 = arith.constant 0 : index
    %21 = vector.load %arg8[%c0_17, %c0_18] : memref<1x128xf32, #tpu.memory_space<vmem>>, vector<1x128xf32>
    %22 = vector.shape_cast %21 : vector<1x128xf32> to vector<1x128xf32>
    %23 = vector.broadcast %22 : vector<1x128xf32> to vector<8x128xf32>
    %cst_19 = arith.constant 0.000000e+00 : f32
    %24 = vector.broadcast %cst_19 : f32 to vector<8x32xf32>
    %cst_20 = arith.constant 0.000000e+00 : f32
    %25 = vector.broadcast %cst_20 : f32 to vector<8x32xf32>
    %cst_21 = arith.constant 0.000000e+00 : f32
    %26 = vector.broadcast %cst_21 : f32 to vector<8x32xf32>
    %cst_22 = arith.constant 0.000000e+00 : f32
    %27 = vector.broadcast %cst_22 : f32 to vector<8x32xf32>
    %28 = vector.extract_strided_slice %17 {offsets = [0, 0], sizes = [8, 128], strides = [1, 1]} : vector<64x128xf32> to vector<8x128xf32>
    %29 = arith.truncf %24 : vector<8x32xf32> to vector<8x32xbf16>
    %cst_23 = arith.constant dense<0.000000e+00> : vector<8x128xf32>
    %30 = tpu.matmul %29, %18, %cst_23 {dimension_numbers = #tpu.dot_dimension_numbers<[1], [0], [0], [1], [0, 0, 1, 1], [], []>} : vector<8x32xbf16>, vector<32x128xbf16>, vector<8x128xf32> -> vector<8x128xf32>
    %31 = arith.addf %28, %30 : vector<8x128xf32>
    %32 = vector.extract_strided_slice %31 {offsets = [0, 0], sizes = [8, 96], strides = [1, 1]} : vector<8x128xf32> to vector<8x96xf32>
    %33 = arith.negf %32 : vector<8x96xf32>
    %34 = math.exp %33 : vector<8x96xf32>
    %cst_24 = arith.constant 1.000000e+00 : f32
    %35 = vector.broadcast %cst_24 : f32 to vector<8x96xf32>
    %36 = arith.addf %35, %34 : vector<8x96xf32>
    %37 = arith.divf %35, %36 : vector<8x96xf32>
    %38 = vector.extract_strided_slice %31 {offsets = [0, 96], sizes = [8, 32], strides = [1, 1]} : vector<8x128xf32> to vector<8x32xf32>
    %39 = math.tanh %38 : vector<8x32xf32>
    %40 = vector.extract_strided_slice %37 {offsets = [0, 0], sizes = [8, 32], strides = [1, 1]} : vector<8x96xf32> to vector<8x32xf32>
    %41 = vector.extract_strided_slice %37 {offsets = [0, 32], sizes = [8, 32], strides = [1, 1]} : vector<8x96xf32> to vector<8x32xf32>
    %42 = vector.extract_strided_slice %37 {offsets = [0, 64], sizes = [8, 32], strides = [1, 1]} : vector<8x96xf32> to vector<8x32xf32>
    %43 = arith.mulf %41, %26 : vector<8x32xf32>
    %44 = arith.mulf %40, %39 : vector<8x32xf32>
    %45 = arith.addf %43, %44 : vector<8x32xf32>
    %46 = math.tanh %45 : vector<8x32xf32>
    %47 = arith.mulf %42, %46 : vector<8x32xf32>
    %48 = arith.truncf %47 : vector<8x32xf32> to vector<8x32xbf16>
    %cst_25 = arith.constant dense<0.000000e+00> : vector<8x128xf32>
    %49 = tpu.matmul %48, %20, %cst_25 {dimension_numbers = #tpu.dot_dimension_numbers<[1], [0], [0], [1], [0, 0, 1, 1], [], []>} : vector<8x32xbf16>, vector<32x128xbf16>, vector<8x128xf32> -> vector<8x128xf32>
    %50 = arith.addf %49, %23 : vector<8x128xf32>
    %51 = arith.truncf %25 : vector<8x32xf32> to vector<8x32xbf16>
    %cst_26 = arith.constant dense<0.000000e+00> : vector<8x128xf32>
    %52 = tpu.matmul %51, %19, %cst_26 {dimension_numbers = #tpu.dot_dimension_numbers<[1], [0], [0], [1], [0, 0, 1, 1], [], []>} : vector<8x32xbf16>, vector<32x128xbf16>, vector<8x128xf32> -> vector<8x128xf32>
    %53 = arith.addf %50, %52 : vector<8x128xf32>
    %54 = vector.extract_strided_slice %53 {offsets = [0, 0], sizes = [8, 96], strides = [1, 1]} : vector<8x128xf32> to vector<8x96xf32>
    %55 = arith.negf %54 : vector<8x96xf32>
    %56 = math.exp %55 : vector<8x96xf32>
    %cst_27 = arith.constant 1.000000e+00 : f32
    %57 = vector.broadcast %cst_27 : f32 to vector<8x96xf32>
    %58 = arith.addf %57, %56 : vector<8x96xf32>
    %59 = arith.divf %57, %58 : vector<8x96xf32>
    %60 = vector.extract_strided_slice %53 {offsets = [0, 96], sizes = [8, 32], strides = [1, 1]} : vector<8x128xf32> to vector<8x32xf32>
    %61 = math.tanh %60 : vector<8x32xf32>
    %62 = vector.extract_strided_slice %59 {offsets = [0, 0], sizes = [8, 32], strides = [1, 1]} : vector<8x96xf32> to vector<8x32xf32>
    %63 = vector.extract_strided_slice %59 {offsets = [0, 32], sizes = [8, 32], strides = [1, 1]} : vector<8x96xf32> to vector<8x32xf32>
    %64 = vector.extract_strided_slice %59 {offsets = [0, 64], sizes = [8, 32], strides = [1, 1]} : vector<8x96xf32> to vector<8x32xf32>
    %65 = arith.mulf %63, %27 : vector<8x32xf32>
    %66 = arith.mulf %62, %61 : vector<8x32xf32>
    %67 = arith.addf %65, %66 : vector<8x32xf32>
    %68 = math.tanh %67 : vector<8x32xf32>
    %69 = arith.mulf %64, %68 : vector<8x32xf32>
    %c0_28 = arith.constant 0 : index
    %c0_29 = arith.constant 0 : index
    %70 = vector.load %arg13[%c0_28, %c0_29] : memref<64x32xf32, #tpu.memory_space<vmem>>, vector<8x32xf32>
    tpu.vector_store %arg13[%c0_28, %c0_29], %69 {strides = array<i32>} : memref<64x32xf32, #tpu.memory_space<vmem>>, vector<8x32xf32>,
    %71 = vector.extract_strided_slice %17 {offsets = [8, 0], sizes = [8, 128], strides = [1, 1]} : vector<64x128xf32> to vector<8x128xf32>
    %72 = arith.truncf %47 : vector<8x32xf32> to vector<8x32xbf16>
    %cst_30 = arith.constant dense<0.000000e+00> : vector<8x128xf32>
    %73 = tpu.matmul %72, %18, %cst_30 {dimension_numbers = #tpu.dot_dimension_numbers<[1], [0], [0], [1], [0, 0, 1, 1], [], []>} : vector<8x32xbf16>, vector<32x128xbf16>, vector<8x128xf32> -> vector<8x128xf32>
    %74 = arith.addf %71, %73 : vector<8x128xf32>
    %75 = vector.extract_strided_slice %74 {offsets = [0, 0], sizes = [8, 96], strides = [1, 1]} : vector<8x128xf32> to vector<8x96xf32>
    %76 = arith.negf %75 : vector<8x96xf32>
    %77 = math.exp %76 : vector<8x96xf32>
    %cst_31 = arith.constant 1.000000e+00 : f32
    %78 = vector.broadcast %cst_31 : f32 to vector<8x96xf32>
    %79 = arith.addf %78, %77 : vector<8x96xf32>
    %80 = arith.divf %78, %79 : vector<8x96xf32>
    %81 = vector.extract_strided_slice %74 {offsets = [0, 96], sizes = [8, 32], strides = [1, 1]} : vector<8x128xf32> to vector<8x32xf32>
    %82 = math.tanh %81 : vector<8x32xf32>
    %83 = vector.extract_strided_slice %80 {offsets = [0, 0], sizes = [8, 32], strides = [1, 1]} : vector<8x96xf32> to vector<8x32xf32>
    %84 = vector.extract_strided_slice %80 {offsets = [0, 32], sizes = [8, 32], strides = [1, 1]} : vector<8x96xf32> to vector<8x32xf32>
    %85 = vector.extract_strided_slice %80 {offsets = [0, 64], sizes = [8, 32], strides = [1, 1]} : vector<8x96xf32> to vector<8x32xf32>
    %86 = arith.mulf %84, %45 : vector<8x32xf32>
    %87 = arith.mulf %83, %82 : vector<8x32xf32>
    %88 = arith.addf %86, %87 : vector<8x32xf32>
    %89 = math.tanh %88 : vector<8x32xf32>
    %90 = arith.mulf %85, %89 : vector<8x32xf32>
    %91 = arith.truncf %90 : vector<8x32xf32> to vector<8x32xbf16>
    %cst_32 = arith.constant dense<0.000000e+00> : vector<8x128xf32>
    %92 = tpu.matmul %91, %20, %cst_32 {dimension_numbers = #tpu.dot_dimension_numbers<[1], [0], [0], [1], [0, 0, 1, 1], [], []>} : vector<8x32xbf16>, vector<32x128xbf16>, vector<8x128xf32> -> vector<8x128xf32>
    %93 = arith.addf %92, %23 : vector<8x128xf32>
    %94 = arith.truncf %69 : vector<8x32xf32> to vector<8x32xbf16>
    %cst_33 = arith.constant dense<0.000000e+00> : vector<8x128xf32>
    %95 = tpu.matmul %94, %19, %cst_33 {dimension_numbers = #tpu.dot_dimension_numbers<[1], [0], [0], [1], [0, 0, 1, 1], [], []>} : vector<8x32xbf16>, vector<32x128xbf16>, vector<8x128xf32> -> vector<8x128xf32>
    %96 = arith.addf %93, %95 : vector<8x128xf32>
    %97 = vector.extract_strided_slice %96 {offsets = [0, 0], sizes = [8, 96], strides = [1, 1]} : vector<8x128xf32> to vector<8x96xf32>
    %98 = arith.negf %97 : vector<8x96xf32>
    %99 = math.exp %98 : vector<8x96xf32>
    %cst_34 = arith.constant 1.000000e+00 : f32
    %100 = vector.broadcast %cst_34 : f32 to vector<8x96xf32>
    %101 = arith.addf %100, %99 : vector<8x96xf32>
    %102 = arith.divf %100, %101 : vector<8x96xf32>
    %103 = vector.extract_strided_slice %96 {offsets = [0, 96], sizes = [8, 32], strides = [1, 1]} : vector<8x128xf32> to vector<8x32xf32>
    %104 = math.tanh %103 : vector<8x32xf32>
    %105 = vector.extract_strided_slice %102 {offsets = [0, 0], sizes = [8, 32], strides = [1, 1]} : vector<8x96xf32> to vector<8x32xf32>
    %106 = vector.extract_strided_slice %102 {offsets = [0, 32], sizes = [8, 32], strides = [1, 1]} : vector<8x96xf32> to vector<8x32xf32>
    %107 = vector.extract_strided_slice %102 {offsets = [0, 64], sizes = [8, 32], strides = [1, 1]} : vector<8x96xf32> to vector<8x32xf32>
    %108 = arith.mulf %106, %67 : vector<8x32xf32>
    %109 = arith.mulf %105, %104 : vector<8x32xf32>
    %110 = arith.addf %108, %109 : vector<8x32xf32>
    %111 = math.tanh %110 : vector<8x32xf32>
    %112 = arith.mulf %107, %111 : vector<8x32xf32>
    %c8 = arith.constant 8 : index
    %c0_35 = arith.constant 0 : index
    %113 = vector.load %arg13[%c8, %c0_35] : memref<64x32xf32, #tpu.memory_space<vmem>>, vector<8x32xf32>
    tpu.vector_store %arg13[%c8, %c0_35], %112 {strides = array<i32>} : memref<64x32xf32, #tpu.memory_space<vmem>>, vector<8x32xf32>,
    %114 = vector.extract_strided_slice %17 {offsets = [16, 0], sizes = [8, 128], strides = [1, 1]} : vector<64x128xf32> to vector<8x128xf32>
    %115 = arith.truncf %90 : vector<8x32xf32> to vector<8x32xbf16>
    %cst_36 = arith.constant dense<0.000000e+00> : vector<8x128xf32>
    %116 = tpu.matmul %115, %18, %cst_36 {dimension_numbers = #tpu.dot_dimension_numbers<[1], [0], [0], [1], [0, 0, 1, 1], [], []>} : vector<8x32xbf16>, vector<32x128xbf16>, vector<8x128xf32> -> vector<8x128xf32>
    %117 = arith.addf %114, %116 : vector<8x128xf32>
    %118 = vector.extract_strided_slice %117 {offsets = [0, 0], sizes = [8, 96], strides = [1, 1]} : vector<8x128xf32> to vector<8x96xf32>
    %119 = arith.negf %118 : vector<8x96xf32>
    %120 = math.exp %119 : vector<8x96xf32>
    %cst_37 = arith.constant 1.000000e+00 : f32
    %121 = vector.broadcast %cst_37 : f32 to vector<8x96xf32>
    %122 = arith.addf %121, %120 : vector<8x96xf32>
    %123 = arith.divf %121, %122 : vector<8x96xf32>
    %124 = vector.extract_strided_slice %117 {offsets = [0, 96], sizes = [8, 32], strides = [1, 1]} : vector<8x128xf32> to vector<8x32xf32>
    %125 = math.tanh %124 : vector<8x32xf32>
    %126 = vector.extract_strided_slice %123 {offsets = [0, 0], sizes = [8, 32], strides = [1, 1]} : vector<8x96xf32> to vector<8x32xf32>
    %127 = vector.extract_strided_slice %123 {offsets = [0, 32], sizes = [8, 32], strides = [1, 1]} : vector<8x96xf32> to vector<8x32xf32>
    %128 = vector.extract_strided_slice %123 {offsets = [0, 64], sizes = [8, 32], strides = [1, 1]} : vector<8x96xf32> to vector<8x32xf32>
    %129 = arith.mulf %127, %88 : vector<8x32xf32>
    %130 = arith.mulf %126, %125 : vector<8x32xf32>
    %131 = arith.addf %129, %130 : vector<8x32xf32>
    %132 = math.tanh %131 : vector<8x32xf32>
    %133 = arith.mulf %128, %132 : vector<8x32xf32>
    %134 = arith.truncf %133 : vector<8x32xf32> to vector<8x32xbf16>
    %cst_38 = arith.constant dense<0.000000e+00> : vector<8x128xf32>
    %135 = tpu.matmul %134, %20, %cst_38 {dimension_numbers = #tpu.dot_dimension_numbers<[1], [0], [0], [1], [0, 0, 1, 1], [], []>} : vector<8x32xbf16>, vector<32x128xbf16>, vector<8x128xf32> -> vector<8x128xf32>
    %136 = arith.addf %135, %23 : vector<8x128xf32>
    %137 = arith.truncf %112 : vector<8x32xf32> to vector<8x32xbf16>
    %cst_39 = arith.constant dense<0.000000e+00> : vector<8x128xf32>
    %138 = tpu.matmul %137, %19, %cst_39 {dimension_numbers = #tpu.dot_dimension_numbers<[1], [0], [0], [1], [0, 0, 1, 1], [], []>} : vector<8x32xbf16>, vector<32x128xbf16>, vector<8x128xf32> -> vector<8x128xf32>
    %139 = arith.addf %136, %138 : vector<8x128xf32>
    %140 = vector.extract_strided_slice %139 {offsets = [0, 0], sizes = [8, 96], strides = [1, 1]} : vector<8x128xf32> to vector<8x96xf32>
    %141 = arith.negf %140 : vector<8x96xf32>
    %142 = math.exp %141 : vector<8x96xf32>
    %cst_40 = arith.constant 1.000000e+00 : f32
    %143 = vector.broadcast %cst_40 : f32 to vector<8x96xf32>
    %144 = arith.addf %143, %142 : vector<8x96xf32>
    %145 = arith.divf %143, %144 : vector<8x96xf32>
    %146 = vector.extract_strided_slice %139 {offsets = [0, 96], sizes = [8, 32], strides = [1, 1]} : vector<8x128xf32> to vector<8x32xf32>
    %147 = math.tanh %146 : vector<8x32xf32>
    %148 = vector.extract_strided_slice %145 {offsets = [0, 0], sizes = [8, 32], strides = [1, 1]} : vector<8x96xf32> to vector<8x32xf32>
    %149 = vector.extract_strided_slice %145 {offsets = [0, 32], sizes = [8, 32], strides = [1, 1]} : vector<8x96xf32> to vector<8x32xf32>
    %150 = vector.extract_strided_slice %145 {offsets = [0, 64], sizes = [8, 32], strides = [1, 1]} : vector<8x96xf32> to vector<8x32xf32>
    %151 = arith.mulf %149, %110 : vector<8x32xf32>
    %152 = arith.mulf %148, %147 : vector<8x32xf32>
    %153 = arith.addf %151, %152 : vector<8x32xf32>
    %154 = math.tanh %153 : vector<8x32xf32>
    %155 = arith.mulf %150, %154 : vector<8x32xf32>
    %c16 = arith.constant 16 : index
    %c0_41 = arith.constant 0 : index
    %156 = vector.load %arg13[%c16, %c0_41] : memref<64x32xf32, #tpu.memory_space<vmem>>, vector<8x32xf32>
    tpu.vector_store %arg13[%c16, %c0_41], %155 {strides = array<i32>} : memref<64x32xf32, #tpu.memory_space<vmem>>, vector<8x32xf32>,
    %157 = vector.extract_strided_slice %17 {offsets = [24, 0], sizes = [8, 128], strides = [1, 1]} : vector<64x128xf32> to vector<8x128xf32>
    %158 = arith.truncf %133 : vector<8x32xf32> to vector<8x32xbf16>
    %cst_42 = arith.constant dense<0.000000e+00> : vector<8x128xf32>
    %159 = tpu.matmul %158, %18, %cst_42 {dimension_numbers = #tpu.dot_dimension_numbers<[1], [0], [0], [1], [0, 0, 1, 1], [], []>} : vector<8x32xbf16>, vector<32x128xbf16>, vector<8x128xf32> -> vector<8x128xf32>
    %160 = arith.addf %157, %159 : vector<8x128xf32>
    %161 = vector.extract_strided_slice %160 {offsets = [0, 0], sizes = [8, 96], strides = [1, 1]} : vector<8x128xf32> to vector<8x96xf32>
    %162 = arith.negf %161 : vector<8x96xf32>
    %163 = math.exp %162 : vector<8x96xf32>
    %cst_43 = arith.constant 1.000000e+00 : f32
    %164 = vector.broadcast %cst_43 : f32 to vector<8x96xf32>
    %165 = arith.addf %164, %163 : vector<8x96xf32>
    %166 = arith.divf %164, %165 : vector<8x96xf32>
    %167 = vector.extract_strided_slice %160 {offsets = [0, 96], sizes = [8, 32], strides = [1, 1]} : vector<8x128xf32> to vector<8x32xf32>
    %168 = math.tanh %167 : vector<8x32xf32>
    %169 = vector.extract_strided_slice %166 {offsets = [0, 0], sizes = [8, 32], strides = [1, 1]} : vector<8x96xf32> to vector<8x32xf32>
    %170 = vector.extract_strided_slice %166 {offsets = [0, 32], sizes = [8, 32], strides = [1, 1]} : vector<8x96xf32> to vector<8x32xf32>
    %171 = vector.extract_strided_slice %166 {offsets = [0, 64], sizes = [8, 32], strides = [1, 1]} : vector<8x96xf32> to vector<8x32xf32>
    %172 = arith.mulf %170, %131 : vector<8x32xf32>
    %173 = arith.mulf %169, %168 : vector<8x32xf32>
    %174 = arith.addf %172, %173 : vector<8x32xf32>
    %175 = math.tanh %174 : vector<8x32xf32>
    %176 = arith.mulf %171, %175 : vector<8x32xf32>
    %177 = arith.truncf %176 : vector<8x32xf32> to vector<8x32xbf16>
    %cst_44 = arith.constant dense<0.000000e+00> : vector<8x128xf32>
    %178 = tpu.matmul %177, %20, %cst_44 {dimension_numbers = #tpu.dot_dimension_numbers<[1], [0], [0], [1], [0, 0, 1, 1], [], []>} : vector<8x32xbf16>, vector<32x128xbf16>, vector<8x128xf32> -> vector<8x128xf32>
    %179 = arith.addf %178, %23 : vector<8x128xf32>
    %180 = arith.truncf %155 : vector<8x32xf32> to vector<8x32xbf16>
    %cst_45 = arith.constant dense<0.000000e+00> : vector<8x128xf32>
    %181 = tpu.matmul %180, %19, %cst_45 {dimension_numbers = #tpu.dot_dimension_numbers<[1], [0], [0], [1], [0, 0, 1, 1], [], []>} : vector<8x32xbf16>, vector<32x128xbf16>, vector<8x128xf32> -> vector<8x128xf32>
    %182 = arith.addf %179, %181 : vector<8x128xf32>
    %183 = vector.extract_strided_slice %182 {offsets = [0, 0], sizes = [8, 96], strides = [1, 1]} : vector<8x128xf32> to vector<8x96xf32>
    %184 = arith.negf %183 : vector<8x96xf32>
    %185 = math.exp %184 : vector<8x96xf32>
    %cst_46 = arith.constant 1.000000e+00 : f32
    %186 = vector.broadcast %cst_46 : f32 to vector<8x96xf32>
    %187 = arith.addf %186, %185 : vector<8x96xf32>
    %188 = arith.divf %186, %187 : vector<8x96xf32>
    %189 = vector.extract_strided_slice %182 {offsets = [0, 96], sizes = [8, 32], strides = [1, 1]} : vector<8x128xf32> to vector<8x32xf32>
    %190 = math.tanh %189 : vector<8x32xf32>
    %191 = vector.extract_strided_slice %188 {offsets = [0, 0], sizes = [8, 32], strides = [1, 1]} : vector<8x96xf32> to vector<8x32xf32>
    %192 = vector.extract_strided_slice %188 {offsets = [0, 32], sizes = [8, 32], strides = [1, 1]} : vector<8x96xf32> to vector<8x32xf32>
    %193 = vector.extract_strided_slice %188 {offsets = [0, 64], sizes = [8, 32], strides = [1, 1]} : vector<8x96xf32> to vector<8x32xf32>
    %194 = arith.mulf %192, %153 : vector<8x32xf32>
    %195 = arith.mulf %191, %190 : vector<8x32xf32>
    %196 = arith.addf %194, %195 : vector<8x32xf32>
    %197 = math.tanh %196 : vector<8x32xf32>
    %198 = arith.mulf %193, %197 : vector<8x32xf32>
    %c24 = arith.constant 24 : index
    %c0_47 = arith.constant 0 : index
    %199 = vector.load %arg13[%c24, %c0_47] : memref<64x32xf32, #tpu.memory_space<vmem>>, vector<8x32xf32>
    tpu.vector_store %arg13[%c24, %c0_47], %198 {strides = array<i32>} : memref<64x32xf32, #tpu.memory_space<vmem>>, vector<8x32xf32>,
    %200 = vector.extract_strided_slice %17 {offsets = [32, 0], sizes = [8, 128], strides = [1, 1]} : vector<64x128xf32> to vector<8x128xf32>
    %201 = arith.truncf %176 : vector<8x32xf32> to vector<8x32xbf16>
    %cst_48 = arith.constant dense<0.000000e+00> : vector<8x128xf32>
    %202 = tpu.matmul %201, %18, %cst_48 {dimension_numbers = #tpu.dot_dimension_numbers<[1], [0], [0], [1], [0, 0, 1, 1], [], []>} : vector<8x32xbf16>, vector<32x128xbf16>, vector<8x128xf32> -> vector<8x128xf32>
    %203 = arith.addf %200, %202 : vector<8x128xf32>
    %204 = vector.extract_strided_slice %203 {offsets = [0, 0], sizes = [8, 96], strides = [1, 1]} : vector<8x128xf32> to vector<8x96xf32>
    %205 = arith.negf %204 : vector<8x96xf32>
    %206 = math.exp %205 : vector<8x96xf32>
    %cst_49 = arith.constant 1.000000e+00 : f32
    %207 = vector.broadcast %cst_49 : f32 to vector<8x96xf32>
    %208 = arith.addf %207, %206 : vector<8x96xf32>
    %209 = arith.divf %207, %208 : vector<8x96xf32>
    %210 = vector.extract_strided_slice %203 {offsets = [0, 96], sizes = [8, 32], strides = [1, 1]} : vector<8x128xf32> to vector<8x32xf32>
    %211 = math.tanh %210 : vector<8x32xf32>
    %212 = vector.extract_strided_slice %209 {offsets = [0, 0], sizes = [8, 32], strides = [1, 1]} : vector<8x96xf32> to vector<8x32xf32>
    %213 = vector.extract_strided_slice %209 {offsets = [0, 32], sizes = [8, 32], strides = [1, 1]} : vector<8x96xf32> to vector<8x32xf32>
    %214 = vector.extract_strided_slice %209 {offsets = [0, 64], sizes = [8, 32], strides = [1, 1]} : vector<8x96xf32> to vector<8x32xf32>
    %215 = arith.mulf %213, %174 : vector<8x32xf32>
    %216 = arith.mulf %212, %211 : vector<8x32xf32>
    %217 = arith.addf %215, %216 : vector<8x32xf32>
    %218 = math.tanh %217 : vector<8x32xf32>
    %219 = arith.mulf %214, %218 : vector<8x32xf32>
    %220 = arith.truncf %219 : vector<8x32xf32> to vector<8x32xbf16>
    %cst_50 = arith.constant dense<0.000000e+00> : vector<8x128xf32>
    %221 = tpu.matmul %220, %20, %cst_50 {dimension_numbers = #tpu.dot_dimension_numbers<[1], [0], [0], [1], [0, 0, 1, 1], [], []>} : vector<8x32xbf16>, vector<32x128xbf16>, vector<8x128xf32> -> vector<8x128xf32>
    %222 = arith.addf %221, %23 : vector<8x128xf32>
    %223 = arith.truncf %198 : vector<8x32xf32> to vector<8x32xbf16>
    %cst_51 = arith.constant dense<0.000000e+00> : vector<8x128xf32>
    %224 = tpu.matmul %223, %19, %cst_51 {dimension_numbers = #tpu.dot_dimension_numbers<[1], [0], [0], [1], [0, 0, 1, 1], [], []>} : vector<8x32xbf16>, vector<32x128xbf16>, vector<8x128xf32> -> vector<8x128xf32>
    %225 = arith.addf %222, %224 : vector<8x128xf32>
    %226 = vector.extract_strided_slice %225 {offsets = [0, 0], sizes = [8, 96], strides = [1, 1]} : vector<8x128xf32> to vector<8x96xf32>
    %227 = arith.negf %226 : vector<8x96xf32>
    %228 = math.exp %227 : vector<8x96xf32>
    %cst_52 = arith.constant 1.000000e+00 : f32
    %229 = vector.broadcast %cst_52 : f32 to vector<8x96xf32>
    %230 = arith.addf %229, %228 : vector<8x96xf32>
    %231 = arith.divf %229, %230 : vector<8x96xf32>
    %232 = vector.extract_strided_slice %225 {offsets = [0, 96], sizes = [8, 32], strides = [1, 1]} : vector<8x128xf32> to vector<8x32xf32>
    %233 = math.tanh %232 : vector<8x32xf32>
    %234 = vector.extract_strided_slice %231 {offsets = [0, 0], sizes = [8, 32], strides = [1, 1]} : vector<8x96xf32> to vector<8x32xf32>
    %235 = vector.extract_strided_slice %231 {offsets = [0, 32], sizes = [8, 32], strides = [1, 1]} : vector<8x96xf32> to vector<8x32xf32>
    %236 = vector.extract_strided_slice %231 {offsets = [0, 64], sizes = [8, 32], strides = [1, 1]} : vector<8x96xf32> to vector<8x32xf32>
    %237 = arith.mulf %235, %196 : vector<8x32xf32>
    %238 = arith.mulf %234, %233 : vector<8x32xf32>
    %239 = arith.addf %237, %238 : vector<8x32xf32>
    %240 = math.tanh %239 : vector<8x32xf32>
    %241 = arith.mulf %236, %240 : vector<8x32xf32>
    %c32 = arith.constant 32 : index
    %c0_53 = arith.constant 0 : index
    %242 = vector.load %arg13[%c32, %c0_53] : memref<64x32xf32, #tpu.memory_space<vmem>>, vector<8x32xf32>
    tpu.vector_store %arg13[%c32, %c0_53], %241 {strides = array<i32>} : memref<64x32xf32, #tpu.memory_space<vmem>>, vector<8x32xf32>,
    %243 = vector.extract_strided_slice %17 {offsets = [40, 0], sizes = [8, 128], strides = [1, 1]} : vector<64x128xf32> to vector<8x128xf32>
    %244 = arith.truncf %219 : vector<8x32xf32> to vector<8x32xbf16>
    %cst_54 = arith.constant dense<0.000000e+00> : vector<8x128xf32>
    %245 = tpu.matmul %244, %18, %cst_54 {dimension_numbers = #tpu.dot_dimension_numbers<[1], [0], [0], [1], [0, 0, 1, 1], [], []>} : vector<8x32xbf16>, vector<32x128xbf16>, vector<8x128xf32> -> vector<8x128xf32>
    %246 = arith.addf %243, %245 : vector<8x128xf32>
    %247 = vector.extract_strided_slice %246 {offsets = [0, 0], sizes = [8, 96], strides = [1, 1]} : vector<8x128xf32> to vector<8x96xf32>
    %248 = arith.negf %247 : vector<8x96xf32>
    %249 = math.exp %248 : vector<8x96xf32>
    %cst_55 = arith.constant 1.000000e+00 : f32
    %250 = vector.broadcast %cst_55 : f32 to vector<8x96xf32>
    %251 = arith.addf %250, %249 : vector<8x96xf32>
    %252 = arith.divf %250, %251 : vector<8x96xf32>
    %253 = vector.extract_strided_slice %246 {offsets = [0, 96], sizes = [8, 32], strides = [1, 1]} : vector<8x128xf32> to vector<8x32xf32>
    %254 = math.tanh %253 : vector<8x32xf32>
    %255 = vector.extract_strided_slice %252 {offsets = [0, 0], sizes = [8, 32], strides = [1, 1]} : vector<8x96xf32> to vector<8x32xf32>
    %256 = vector.extract_strided_slice %252 {offsets = [0, 32], sizes = [8, 32], strides = [1, 1]} : vector<8x96xf32> to vector<8x32xf32>
    %257 = vector.extract_strided_slice %252 {offsets = [0, 64], sizes = [8, 32], strides = [1, 1]} : vector<8x96xf32> to vector<8x32xf32>
    %258 = arith.mulf %256, %217 : vector<8x32xf32>
    %259 = arith.mulf %255, %254 : vector<8x32xf32>
    %260 = arith.addf %258, %259 : vector<8x32xf32>
    %261 = math.tanh %260 : vector<8x32xf32>
    %262 = arith.mulf %257, %261 : vector<8x32xf32>
    %263 = arith.truncf %262 : vector<8x32xf32> to vector<8x32xbf16>
    %cst_56 = arith.constant dense<0.000000e+00> : vector<8x128xf32>
    %264 = tpu.matmul %263, %20, %cst_56 {dimension_numbers = #tpu.dot_dimension_numbers<[1], [0], [0], [1], [0, 0, 1, 1], [], []>} : vector<8x32xbf16>, vector<32x128xbf16>, vector<8x128xf32> -> vector<8x128xf32>
    %265 = arith.addf %264, %23 : vector<8x128xf32>
    %266 = arith.truncf %241 : vector<8x32xf32> to vector<8x32xbf16>
    %cst_57 = arith.constant dense<0.000000e+00> : vector<8x128xf32>
    %267 = tpu.matmul %266, %19, %cst_57 {dimension_numbers = #tpu.dot_dimension_numbers<[1], [0], [0], [1], [0, 0, 1, 1], [], []>} : vector<8x32xbf16>, vector<32x128xbf16>, vector<8x128xf32> -> vector<8x128xf32>
    %268 = arith.addf %265, %267 : vector<8x128xf32>
    %269 = vector.extract_strided_slice %268 {offsets = [0, 0], sizes = [8, 96], strides = [1, 1]} : vector<8x128xf32> to vector<8x96xf32>
    %270 = arith.negf %269 : vector<8x96xf32>
    %271 = math.exp %270 : vector<8x96xf32>
    %cst_58 = arith.constant 1.000000e+00 : f32
    %272 = vector.broadcast %cst_58 : f32 to vector<8x96xf32>
    %273 = arith.addf %272, %271 : vector<8x96xf32>
    %274 = arith.divf %272, %273 : vector<8x96xf32>
    %275 = vector.extract_strided_slice %268 {offsets = [0, 96], sizes = [8, 32], strides = [1, 1]} : vector<8x128xf32> to vector<8x32xf32>
    %276 = math.tanh %275 : vector<8x32xf32>
    %277 = vector.extract_strided_slice %274 {offsets = [0, 0], sizes = [8, 32], strides = [1, 1]} : vector<8x96xf32> to vector<8x32xf32>
    %278 = vector.extract_strided_slice %274 {offsets = [0, 32], sizes = [8, 32], strides = [1, 1]} : vector<8x96xf32> to vector<8x32xf32>
    %279 = vector.extract_strided_slice %274 {offsets = [0, 64], sizes = [8, 32], strides = [1, 1]} : vector<8x96xf32> to vector<8x32xf32>
    %280 = arith.mulf %278, %239 : vector<8x32xf32>
    %281 = arith.mulf %277, %276 : vector<8x32xf32>
    %282 = arith.addf %280, %281 : vector<8x32xf32>
    %283 = math.tanh %282 : vector<8x32xf32>
    %284 = arith.mulf %279, %283 : vector<8x32xf32>
    %c40 = arith.constant 40 : index
    %c0_59 = arith.constant 0 : index
    %285 = vector.load %arg13[%c40, %c0_59] : memref<64x32xf32, #tpu.memory_space<vmem>>, vector<8x32xf32>
    tpu.vector_store %arg13[%c40, %c0_59], %284 {strides = array<i32>} : memref<64x32xf32, #tpu.memory_space<vmem>>, vector<8x32xf32>,
    %286 = vector.extract_strided_slice %17 {offsets = [48, 0], sizes = [8, 128], strides = [1, 1]} : vector<64x128xf32> to vector<8x128xf32>
    %287 = arith.truncf %262 : vector<8x32xf32> to vector<8x32xbf16>
    %cst_60 = arith.constant dense<0.000000e+00> : vector<8x128xf32>
    %288 = tpu.matmul %287, %18, %cst_60 {dimension_numbers = #tpu.dot_dimension_numbers<[1], [0], [0], [1], [0, 0, 1, 1], [], []>} : vector<8x32xbf16>, vector<32x128xbf16>, vector<8x128xf32> -> vector<8x128xf32>
    %289 = arith.addf %286, %288 : vector<8x128xf32>
    %290 = vector.extract_strided_slice %289 {offsets = [0, 0], sizes = [8, 96], strides = [1, 1]} : vector<8x128xf32> to vector<8x96xf32>
    %291 = arith.negf %290 : vector<8x96xf32>
    %292 = math.exp %291 : vector<8x96xf32>
    %cst_61 = arith.constant 1.000000e+00 : f32
    %293 = vector.broadcast %cst_61 : f32 to vector<8x96xf32>
    %294 = arith.addf %293, %292 : vector<8x96xf32>
    %295 = arith.divf %293, %294 : vector<8x96xf32>
    %296 = vector.extract_strided_slice %289 {offsets = [0, 96], sizes = [8, 32], strides = [1, 1]} : vector<8x128xf32> to vector<8x32xf32>
    %297 = math.tanh %296 : vector<8x32xf32>
    %298 = vector.extract_strided_slice %295 {offsets = [0, 0], sizes = [8, 32], strides = [1, 1]} : vector<8x96xf32> to vector<8x32xf32>
    %299 = vector.extract_strided_slice %295 {offsets = [0, 32], sizes = [8, 32], strides = [1, 1]} : vector<8x96xf32> to vector<8x32xf32>
    %300 = vector.extract_strided_slice %295 {offsets = [0, 64], sizes = [8, 32], strides = [1, 1]} : vector<8x96xf32> to vector<8x32xf32>
    %301 = arith.mulf %299, %260 : vector<8x32xf32>
    %302 = arith.mulf %298, %297 : vector<8x32xf32>
    %303 = arith.addf %301, %302 : vector<8x32xf32>
    %304 = math.tanh %303 : vector<8x32xf32>
    %305 = arith.mulf %300, %304 : vector<8x32xf32>
    %306 = arith.truncf %305 : vector<8x32xf32> to vector<8x32xbf16>
    %cst_62 = arith.constant dense<0.000000e+00> : vector<8x128xf32>
    %307 = tpu.matmul %306, %20, %cst_62 {dimension_numbers = #tpu.dot_dimension_numbers<[1], [0], [0], [1], [0, 0, 1, 1], [], []>} : vector<8x32xbf16>, vector<32x128xbf16>, vector<8x128xf32> -> vector<8x128xf32>
    %308 = arith.addf %307, %23 : vector<8x128xf32>
    %309 = arith.truncf %284 : vector<8x32xf32> to vector<8x32xbf16>
    %cst_63 = arith.constant dense<0.000000e+00> : vector<8x128xf32>
    %310 = tpu.matmul %309, %19, %cst_63 {dimension_numbers = #tpu.dot_dimension_numbers<[1], [0], [0], [1], [0, 0, 1, 1], [], []>} : vector<8x32xbf16>, vector<32x128xbf16>, vector<8x128xf32> -> vector<8x128xf32>
    %311 = arith.addf %308, %310 : vector<8x128xf32>
    %312 = vector.extract_strided_slice %311 {offsets = [0, 0], sizes = [8, 96], strides = [1, 1]} : vector<8x128xf32> to vector<8x96xf32>
    %313 = arith.negf %312 : vector<8x96xf32>
    %314 = math.exp %313 : vector<8x96xf32>
    %cst_64 = arith.constant 1.000000e+00 : f32
    %315 = vector.broadcast %cst_64 : f32 to vector<8x96xf32>
    %316 = arith.addf %315, %314 : vector<8x96xf32>
    %317 = arith.divf %315, %316 : vector<8x96xf32>
    %318 = vector.extract_strided_slice %311 {offsets = [0, 96], sizes = [8, 32], strides = [1, 1]} : vector<8x128xf32> to vector<8x32xf32>
    %319 = math.tanh %318 : vector<8x32xf32>
    %320 = vector.extract_strided_slice %317 {offsets = [0, 0], sizes = [8, 32], strides = [1, 1]} : vector<8x96xf32> to vector<8x32xf32>
    %321 = vector.extract_strided_slice %317 {offsets = [0, 32], sizes = [8, 32], strides = [1, 1]} : vector<8x96xf32> to vector<8x32xf32>
    %322 = vector.extract_strided_slice %317 {offsets = [0, 64], sizes = [8, 32], strides = [1, 1]} : vector<8x96xf32> to vector<8x32xf32>
    %323 = arith.mulf %321, %282 : vector<8x32xf32>
    %324 = arith.mulf %320, %319 : vector<8x32xf32>
    %325 = arith.addf %323, %324 : vector<8x32xf32>
    %326 = math.tanh %325 : vector<8x32xf32>
    %327 = arith.mulf %322, %326 : vector<8x32xf32>
    %c48 = arith.constant 48 : index
    %c0_65 = arith.constant 0 : index
    %328 = vector.load %arg13[%c48, %c0_65] : memref<64x32xf32, #tpu.memory_space<vmem>>, vector<8x32xf32>
    tpu.vector_store %arg13[%c48, %c0_65], %327 {strides = array<i32>} : memref<64x32xf32, #tpu.memory_space<vmem>>, vector<8x32xf32>,
    %329 = vector.extract_strided_slice %17 {offsets = [56, 0], sizes = [8, 128], strides = [1, 1]} : vector<64x128xf32> to vector<8x128xf32>
    %330 = arith.truncf %305 : vector<8x32xf32> to vector<8x32xbf16>
    %cst_66 = arith.constant dense<0.000000e+00> : vector<8x128xf32>
    %331 = tpu.matmul %330, %18, %cst_66 {dimension_numbers = #tpu.dot_dimension_numbers<[1], [0], [0], [1], [0, 0, 1, 1], [], []>} : vector<8x32xbf16>, vector<32x128xbf16>, vector<8x128xf32> -> vector<8x128xf32>
    %332 = arith.addf %329, %331 : vector<8x128xf32>
    %333 = vector.extract_strided_slice %332 {offsets = [0, 0], sizes = [8, 96], strides = [1, 1]} : vector<8x128xf32> to vector<8x96xf32>
    %334 = arith.negf %333 : vector<8x96xf32>
    %335 = math.exp %334 : vector<8x96xf32>
    %cst_67 = arith.constant 1.000000e+00 : f32
    %336 = vector.broadcast %cst_67 : f32 to vector<8x96xf32>
    %337 = arith.addf %336, %335 : vector<8x96xf32>
    %338 = arith.divf %336, %337 : vector<8x96xf32>
    %339 = vector.extract_strided_slice %332 {offsets = [0, 96], sizes = [8, 32], strides = [1, 1]} : vector<8x128xf32> to vector<8x32xf32>
    %340 = math.tanh %339 : vector<8x32xf32>
    %341 = vector.extract_strided_slice %338 {offsets = [0, 0], sizes = [8, 32], strides = [1, 1]} : vector<8x96xf32> to vector<8x32xf32>
    %342 = vector.extract_strided_slice %338 {offsets = [0, 32], sizes = [8, 32], strides = [1, 1]} : vector<8x96xf32> to vector<8x32xf32>
    %343 = vector.extract_strided_slice %338 {offsets = [0, 64], sizes = [8, 32], strides = [1, 1]} : vector<8x96xf32> to vector<8x32xf32>
    %344 = arith.mulf %342, %303 : vector<8x32xf32>
    %345 = arith.mulf %341, %340 : vector<8x32xf32>
    %346 = arith.addf %344, %345 : vector<8x32xf32>
    %347 = math.tanh %346 : vector<8x32xf32>
    %348 = arith.mulf %343, %347 : vector<8x32xf32>
    %349 = arith.truncf %348 : vector<8x32xf32> to vector<8x32xbf16>
    %cst_68 = arith.constant dense<0.000000e+00> : vector<8x128xf32>
    %350 = tpu.matmul %349, %20, %cst_68 {dimension_numbers = #tpu.dot_dimension_numbers<[1], [0], [0], [1], [0, 0, 1, 1], [], []>} : vector<8x32xbf16>, vector<32x128xbf16>, vector<8x128xf32> -> vector<8x128xf32>
    %351 = arith.addf %350, %23 : vector<8x128xf32>
    %352 = arith.truncf %327 : vector<8x32xf32> to vector<8x32xbf16>
    %cst_69 = arith.constant dense<0.000000e+00> : vector<8x128xf32>
    %353 = tpu.matmul %352, %19, %cst_69 {dimension_numbers = #tpu.dot_dimension_numbers<[1], [0], [0], [1], [0, 0, 1, 1], [], []>} : vector<8x32xbf16>, vector<32x128xbf16>, vector<8x128xf32> -> vector<8x128xf32>
    %354 = arith.addf %351, %353 : vector<8x128xf32>
    %355 = vector.extract_strided_slice %354 {offsets = [0, 0], sizes = [8, 96], strides = [1, 1]} : vector<8x128xf32> to vector<8x96xf32>
    %356 = arith.negf %355 : vector<8x96xf32>
    %357 = math.exp %356 : vector<8x96xf32>
    %cst_70 = arith.constant 1.000000e+00 : f32
    %358 = vector.broadcast %cst_70 : f32 to vector<8x96xf32>
    %359 = arith.addf %358, %357 : vector<8x96xf32>
    %360 = arith.divf %358, %359 : vector<8x96xf32>
    %361 = vector.extract_strided_slice %354 {offsets = [0, 96], sizes = [8, 32], strides = [1, 1]} : vector<8x128xf32> to vector<8x32xf32>
    %362 = math.tanh %361 : vector<8x32xf32>
    %363 = vector.extract_strided_slice %360 {offsets = [0, 0], sizes = [8, 32], strides = [1, 1]} : vector<8x96xf32> to vector<8x32xf32>
    %364 = vector.extract_strided_slice %360 {offsets = [0, 32], sizes = [8, 32], strides = [1, 1]} : vector<8x96xf32> to vector<8x32xf32>
    %365 = vector.extract_strided_slice %360 {offsets = [0, 64], sizes = [8, 32], strides = [1, 1]} : vector<8x96xf32> to vector<8x32xf32>
    %366 = arith.mulf %364, %325 : vector<8x32xf32>
    %367 = arith.mulf %363, %362 : vector<8x32xf32>
    %368 = arith.addf %366, %367 : vector<8x32xf32>
    %369 = math.tanh %368 : vector<8x32xf32>
    %370 = arith.mulf %365, %369 : vector<8x32xf32>
    %c56 = arith.constant 56 : index
    %c0_71 = arith.constant 0 : index
    %371 = vector.load %arg13[%c56, %c0_71] : memref<64x32xf32, #tpu.memory_space<vmem>>, vector<8x32xf32>
    tpu.vector_store %arg13[%c56, %c0_71], %370 {strides = array<i32>} : memref<64x32xf32, #tpu.memory_space<vmem>>, vector<8x32xf32>,
    %c0_72 = arith.constant 0 : index
    %c0_73 = arith.constant 0 : index
    %372 = vector.load %arg13[%c0_72, %c0_73] : memref<64x32xf32, #tpu.memory_space<vmem>>, vector<64x32xf32>
    %373 = arith.truncf %372 : vector<64x32xf32> to vector<64x32xbf16>
    %c0_74 = arith.constant 0 : index
    %c0_75 = arith.constant 0 : index
    %374 = vector.load %arg10[%c0_74, %c0_75] : memref<32x128xbf16, #tpu.memory_space<vmem>>, vector<32x128xbf16>
    %cst_76 = arith.constant dense<0.000000e+00> : vector<64x128xf32>
    %375 = tpu.matmul %373, %374, %cst_76 {dimension_numbers = #tpu.dot_dimension_numbers<[1], [0], [0], [1], [0, 0, 1, 1], [], []>} : vector<64x32xbf16>, vector<32x128xbf16>, vector<64x128xf32> -> vector<64x128xf32>
    %c0_77 = arith.constant 0 : index
    %c0_78 = arith.constant 0 : index
    %376 = vector.load %arg11[%c0_77, %c0_78] : memref<1x128xf32, #tpu.memory_space<vmem>>, vector<1x128xf32>
    %377 = vector.broadcast %376 : vector<1x128xf32> to vector<64x128xf32>
    %378 = arith.addf %375, %377 : vector<64x128xf32>
    %c0_79 = arith.constant 0 : index
    %c0_80 = arith.constant 0 : index
    %379 = vector.load %arg12[%c0_79, %c0_80] : memref<64x128xf32, #tpu.memory_space<vmem>>, vector<64x128xf32>
    tpu.vector_store %arg12[%c0_79, %c0_80], %378 {strides = array<i32>} : memref<64x128xf32, #tpu.memory_space<vmem>>, vector<64x128xf32>,
    return
  }
  func.func @transform_0(%arg0: i32) -> (i32, i32) {
    %c0_i32 = arith.constant 0 : i32
    %c0_i32_0 = arith.constant 0 : i32
    return %arg0, %c0_i32 : i32, i32
  }
  func.func @transform_1(%arg0: i32) -> (i32, i32) {
    %c0_i32 = arith.constant 0 : i32
    %c0_i32_0 = arith.constant 0 : i32
    %c0_i32_1 = arith.constant 0 : i32
    return %c0_i32, %c0_i32_0 : i32, i32
  }
  func.func @transform_2(%arg0: i32) -> (i32, i32) {
    %c0_i32 = arith.constant 0 : i32
    %c0_i32_0 = arith.constant 0 : i32
    %c0_i32_1 = arith.constant 0 : i32
    return %c0_i32, %c0_i32_0 : i32, i32
  }
  func.func @transform_3(%arg0: i32) -> (i32, i32) {
    %c0_i32 = arith.constant 0 : i32
    %c0_i32_0 = arith.constant 0 : i32
    %c0_i32_1 = arith.constant 0 : i32
    return %c0_i32, %c0_i32_0 : i32, i32
  }
  func.func @transform_4(%arg0: i32) -> (i32, i32) {
    %c0_i32 = arith.constant 0 : i32
    %c0_i32_0 = arith.constant 0 : i32
    %c0_i32_1 = arith.constant 0 : i32
    return %c0_i32, %c0_i32_0 : i32, i32
  }
  func.func @transform_5(%arg0: i32) -> (i32, i32) {
    %c0_i32 = arith.constant 0 : i32
    %c0_i32_0 = arith.constant 0 : i32
    %c0_i32_1 = arith.constant 0 : i32
    return %c0_i32, %c0_i32_0 : i32, i32
  }
  func.func @transform_6(%arg0: i32) -> (i32, i32) {
    %c0_i32 = arith.constant 0 : i32
    %c0_i32_0 = arith.constant 0 : i32
    %c0_i32_1 = arith.constant 0 : i32
    return %c0_i32, %c0_i32_0 : i32, i32
  }
  func.func @transform_7(%arg0: i32) -> (i32, i32) {
    %c0_i32 = arith.constant 0 : i32
    %c0_i32_0 = arith.constant 0 : i32
    %c0_i32_1 = arith.constant 0 : i32
    return %c0_i32, %c0_i32_0 : i32, i32
  }
  func.func @transform_8(%arg0: i32) -> (i32, i32) {
    %c0_i32 = arith.constant 0 : i32
    %c0_i32_0 = arith.constant 0 : i32
    %c0_i32_1 = arith.constant 0 : i32
    return %c0_i32, %c0_i32_0 : i32, i32
  }
  func.func @transform_9(%arg0: i32) -> (i32, i32) {
    %c0_i32 = arith.constant 0 : i32
    %c0_i32_0 = arith.constant 0 : i32
    %c0_i32_1 = arith.constant 0 : i32
    return %c0_i32, %c0_i32_0 : i32, i32
  }
  func.func @transform_10(%arg0: i32) -> (i32, i32) {
    %c0_i32 = arith.constant 0 : i32
    %c0_i32_0 = arith.constant 0 : i32
    %c0_i32_1 = arith.constant 0 : i32
    return %c0_i32, %c0_i32_0 : i32, i32
  }
  func.func @transform_11(%arg0: i32) -> (i32, i32) {
    %c0_i32 = arith.constant 0 : i32
    %c0_i32_0 = arith.constant 0 : i32
    return %arg0, %c0_i32 : i32, i32
  }
}

</mosaic_0001>

<llo_original>
// kernel: tpu_custom_call.1
$region0: #{tpu_custom_call.1}
  #allocation0 [shape = 'u32[]', space=smem, size = 0x4, offset = 0x4, fixed_abs, tag = 'smem constant byte address 0x4 - core index']
  #allocation1 [shape = 'u32[72,128]{1,0:T(1,128)}', space=vmem, size = 0x9000, scoped, tag = 'internal scratch']
  #allocation2 [shape = 'f32[64,32]{1,0:T(8,128)}', space=vmem, size = 0x8000, scoped, tag = 'scratch operand']
  %s0 = inlined_call_operand.vmem [shape: f32[128,42], index: 0, kind: input, shape index: {}]
  %s1 = inlined_call_operand.vmem [shape: bf16[42,64], index: 1, kind: input, shape index: {}]
  %s2 = inlined_call_operand.vmem [shape: f32[1,64], index: 2, kind: input, shape index: {}]
  %s3 = inlined_call_operand.vmem [shape: bf16[32,128], index: 3, kind: input, shape index: {}]
  %s4 = inlined_call_operand.vmem [shape: f32[1,128], index: 4, kind: input, shape index: {}]
  %s5 = inlined_call_operand.vmem [shape: bf16[32,128], index: 5, kind: input, shape index: {}]
  %s6 = inlined_call_operand.vmem [shape: bf16[32,128], index: 6, kind: input, shape index: {}]
  %s7 = inlined_call_operand.vmem [shape: f32[1,128], index: 7, kind: input, shape index: {}]
  %s8 = inlined_call_operand.vmem [shape: bf16[32,128], index: 8, kind: input, shape index: {}]
  %s9 = inlined_call_operand.vmem [shape: bf16[32,128], index: 9, kind: input, shape index: {}]
  %s10 = inlined_call_operand.vmem [shape: f32[1,128], index: 10, kind: input, shape index: {}]
  %s11 = inlined_call_operand.hbm [shape: f32[128,128], index: 11, kind: output, shape index: {}]
  %s12 = sld [smem:[#allocation0]]
  $region77: #{tpu_custom_call.1} parent=0
    _
  %s14 = ssub.s32 1, %s12
  %s15 = scalar_select 0, %s14, %s12
  $region1: #{tpu_custom_call.1} parent=0
    #allocation3 [shape = 'u8[65536]{0}', space=vmem, size = 0x10000, scoped, tag = 'output window, operand 0']
    #allocation4 [shape = 's32[2]{0}', space=sflag, size = 0x8, scoped, tag = 'scoped memory for tpu_custom_call.1']
    %16 = vsyncpa [#allocation4], 0
    %s17 = scalar_lea.sflag [#allocation4], 1
    %18 = vsyncpa %s17, 0
    loop: start=0, step=1, limit=4
    $region2: #{tpu_custom_call.1} parent=1 // loop_pre_header
      _
    $region3: #{tpu_custom_call.1} parent=1 // loop_header
      %s20 = sphi 0, %s24
      %p21 = scmp.ge.s32.totalorder %s20, 4
      %s30 = sphi 0, %s32
      %s33 = sphi 0, %s30
      %s34 = sphi 0, %s33
      %s50 = sphi 0, %s34
      %s54 = sphi 0, %s54
      %s56 = sphi 0, %s54
      %s57 = sphi 0, %s56
      %s71 = sphi 0, %s57
      %s75 = sphi 0, %s75
      %s77 = sphi 0, %s75
      %s78 = sphi 0, %s77
      %s92 = sphi 0, %s78
      %s96 = sphi 0, %s96
      %s98 = sphi 0, %s96
      %s99 = sphi 0, %s98
      %s113 = sphi 0, %s99
      %s117 = sphi 0, %s117
      %s119 = sphi 0, %s117
      %s120 = sphi 0, %s119
      %s134 = sphi 0, %s120
      %s138 = sphi 0, %s138
      %s140 = sphi 0, %s138
      %s141 = sphi 0, %s140
      %s155 = sphi 0, %s141
      %s159 = sphi 0, %s159
      %s161 = sphi 0, %s159
      %s162 = sphi 0, %s161
      %s176 = sphi 0, %s162
      %s180 = sphi 0, %s180
      %s182 = sphi 0, %s180
      %s183 = sphi 0, %s182
      %s197 = sphi 0, %s183
      %s201 = sphi 0, %s201
      %s203 = sphi 0, %s201
      %s204 = sphi 0, %s203
      %s218 = sphi 0, %s204
      %s222 = sphi 0, %s222
      %s224 = sphi 0, %s222
      %s225 = sphi 0, %s224
      %s239 = sphi 0, %s225
      %s243 = sphi 0, %s243
      %s245 = sphi 0, %s243
      %s246 = sphi 0, %s245
      %s260 = sphi 0, %s246
      %s266 = sphi 0, %s268
      %s269 = sphi 0, %s266
      %s270 = sphi 0, %s269
      %s286 = sphi 0, %s270
    $region4: #{tpu_custom_call.1} parent=1 // loop_header_branch
      %23 = sbr.rel (%p21) target = $region8
    $region5: #{tpu_custom_call.1} parent=1 // loop_body
      %s25 = ssub.s32 %s20, 1
      %s26 = ssub.s32 %s20, 2
      %s27 = sadd.s32 %s20, 1
      %s28 = ssub.s32 %s20, %s27
      %p29 = scmp.eq.s32.totalorder %s28, 0
      %s31 = sadd.s32 %s30, 1
      %s32 = scalar_select %p29, %s30, %s31
      %p35 = pneg %p29
      %p36 = scmp.eq.s32.totalorder %s20, 1
      %p37 = por %p35, %p36
      %p38 = scmp.ne.s32.totalorder %s30, %s33
      %p39 = scmp.eq.s32.totalorder %s20, 0
      %p40 = por %p38, %p39
      %p41 = scmp.ne.s32.totalorder %s30, %s33
      %p42 = scmp.eq.s32.totalorder %s25, 1
      %p43 = por %p41, %p42
      %p44 = scmp.ne.s32.totalorder %s33, %s34
      %p45 = scmp.eq.s32.totalorder %s25, 0
      %p46 = por %p44, %p45
      %p47 = scmp.ne.s32.totalorder %s33, %s34
      %p48 = scmp.eq.s32.totalorder %s26, 1
      %p49 = por %p47, %p48
      %p51 = scmp.ne.s32.totalorder %s34, %s50
      %p52 = scmp.eq.s32.totalorder %s26, 0
      %p53 = por %p51, %p52
      %s55 = sadd.s32 %s54, 1
      %p58 = scmp.eq.s32.totalorder %s20, 1
      %p59 = scmp.ne.s32.totalorder %s54, %s56
      %p60 = scmp.eq.s32.totalorder %s20, 0
      %p61 = por %p59, %p60
      %p62 = scmp.ne.s32.totalorder %s54, %s56
      %p63 = scmp.eq.s32.totalorder %s25, 1
      %p64 = por %p62, %p63
      %p65 = scmp.ne.s32.totalorder %s56, %s57
      %p66 = scmp.eq.s32.totalorder %s25, 0
      %p67 = por %p65, %p66
      %p68 = scmp.ne.s32.totalorder %s56, %s57
      %p69 = scmp.eq.s32.totalorder %s26, 1
      %p70 = por %p68, %p69
      %p72 = scmp.ne.s32.totalorder %s57, %s71
      %p73 = scmp.eq.s32.totalorder %s26, 0
      %p74 = por %p72, %p73
      %s76 = sadd.s32 %s75, 1
      %p79 = scmp.eq.s32.totalorder %s20, 1
      %p80 = scmp.ne.s32.totalorder %s75, %s77
      %p81 = scmp.eq.s32.totalorder %s20, 0
      %p82 = por %p80, %p81
      %p83 = scmp.ne.s32.totalorder %s75, %s77
      %p84 = scmp.eq.s32.totalorder %s25, 1
      %p85 = por %p83, %p84
      %p86 = scmp.ne.s32.totalorder %s77, %s78
      %p87 = scmp.eq.s32.totalorder %s25, 0
      %p88 = por %p86, %p87
      %p89 = scmp.ne.s32.totalorder %s77, %s78
      %p90 = scmp.eq.s32.totalorder %s26, 1
      %p91 = por %p89, %p90
      %p93 = scmp.ne.s32.totalorder %s78, %s92
      %p94 = scmp.eq.s32.totalorder %s26, 0
      %p95 = por %p93, %p94
      %s97 = sadd.s32 %s96, 1
      %p100 = scmp.eq.s32.totalorder %s20, 1
      %p101 = scmp.ne.s32.totalorder %s96, %s98
      %p102 = scmp.eq.s32.totalorder %s20, 0
      %p103 = por %p101, %p102
      %p104 = scmp.ne.s32.totalorder %s96, %s98
      %p105 = scmp.eq.s32.totalorder %s25, 1
      %p106 = por %p104, %p105
      %p107 = scmp.ne.s32.totalorder %s98, %s99
      %p108 = scmp.eq.s32.totalorder %s25, 0
      %p109 = por %p107, %p108
      %p110 = scmp.ne.s32.totalorder %s98, %s99
      %p111 = scmp.eq.s32.totalorder %s26, 1
      %p112 = por %p110, %p111
      %p114 = scmp.ne.s32.totalorder %s99, %s113
      %p115 = scmp.eq.s32.totalorder %s26, 0
      %p116 = por %p114, %p115
      %s118 = sadd.s32 %s117, 1
      %p121 = scmp.eq.s32.totalorder %s20, 1
      %p122 = scmp.ne.s32.totalorder %s117, %s119
      %p123 = scmp.eq.s32.totalorder %s20, 0
      %p124 = por %p122, %p123
      %p125 = scmp.ne.s32.totalorder %s117, %s119
      %p126 = scmp.eq.s32.totalorder %s25, 1
      %p127 = por %p125, %p126
      %p128 = scmp.ne.s32.totalorder %s119, %s120
      %p129 = scmp.eq.s32.totalorder %s25, 0
      %p130 = por %p128, %p129
      %p131 = scmp.ne.s32.totalorder %s119, %s120
      %p132 = scmp.eq.s32.totalorder %s26, 1
      %p133 = por %p131, %p132
      %p135 = scmp.ne.s32.totalorder %s120, %s134
      %p136 = scmp.eq.s32.totalorder %s26, 0
      %p137 = por %p135, %p136
      %s139 = sadd.s32 %s138, 1
      %p142 = scmp.eq.s32.totalorder %s20, 1
      %p143 = scmp.ne.s32.totalorder %s138, %s140
      %p144 = scmp.eq.s32.totalorder %s20, 0
      %p145 = por %p143, %p144
      %p146 = scmp.ne.s32.totalorder %s138, %s140
      %p147 = scmp.eq.s32.totalorder %s25, 1
      %p148 = por %p146, %p147
      %p149 = scmp.ne.s32.totalorder %s140, %s141
      %p150 = scmp.eq.s32.totalorder %s25, 0
      %p151 = por %p149, %p150
      %p152 = scmp.ne.s32.totalorder %s140, %s141
      %p153 = scmp.eq.s32.totalorder %s26, 1
      %p154 = por %p152, %p153
      %p156 = scmp.ne.s32.totalorder %s141, %s155
      %p157 = scmp.eq.s32.totalorder %s26, 0
      %p158 = por %p156, %p157
      %s160 = sadd.s32 %s159, 1
      %p163 = scmp.eq.s32.totalorder %s20, 1
      %p164 = scmp.ne.s32.totalorder %s159, %s161
      %p165 = scmp.eq.s32.totalorder %s20, 0
      %p166 = por %p164, %p165
      %p167 = scmp.ne.s32.totalorder %s159, %s161
      %p168 = scmp.eq.s32.totalorder %s25, 1
      %p169 = por %p167, %p168
      %p170 = scmp.ne.s32.totalorder %s161, %s162
      %p171 = scmp.eq.s32.totalorder %s25, 0
      %p172 = por %p170, %p171
      %p173 = scmp.ne.s32.totalorder %s161, %s162
      %p174 = scmp.eq.s32.totalorder %s26, 1
      %p175 = por %p173, %p174
      %p177 = scmp.ne.s32.totalorder %s162, %s176
      %p178 = scmp.eq.s32.totalorder %s26, 0
      %p179 = por %p177, %p178
      %s181 = sadd.s32 %s180, 1
      %p184 = scmp.eq.s32.totalorder %s20, 1
      %p185 = scmp.ne.s32.totalorder %s180, %s182
      %p186 = scmp.eq.s32.totalorder %s20, 0
      %p187 = por %p185, %p186
      %p188 = scmp.ne.s32.totalorder %s180, %s182
      %p189 = scmp.eq.s32.totalorder %s25, 1
      %p190 = por %p188, %p189
      %p191 = scmp.ne.s32.totalorder %s182, %s183
      %p192 = scmp.eq.s32.totalorder %s25, 0
      %p193 = por %p191, %p192
      %p194 = scmp.ne.s32.totalorder %s182, %s183
      %p195 = scmp.eq.s32.totalorder %s26, 1
      %p196 = por %p194, %p195
      %p198 = scmp.ne.s32.totalorder %s183, %s197
      %p199 = scmp.eq.s32.totalorder %s26, 0
      %p200 = por %p198, %p199
      %s202 = sadd.s32 %s201, 1
      %p205 = scmp.eq.s32.totalorder %s20, 1
      %p206 = scmp.ne.s32.totalorder %s201, %s203
      %p207 = scmp.eq.s32.totalorder %s20, 0
      %p208 = por %p206, %p207
      %p209 = scmp.ne.s32.totalorder %s201, %s203
      %p210 = scmp.eq.s32.totalorder %s25, 1
      %p211 = por %p209, %p210
      %p212 = scmp.ne.s32.totalorder %s203, %s204
      %p213 = scmp.eq.s32.totalorder %s25, 0
      %p214 = por %p212, %p213
      %p215 = scmp.ne.s32.totalorder %s203, %s204
      %p216 = scmp.eq.s32.totalorder %s26, 1
      %p217 = por %p215, %p216
      %p219 = scmp.ne.s32.totalorder %s204, %s218
      %p220 = scmp.eq.s32.totalorder %s26, 0
      %p221 = por %p219, %p220
      %s223 = sadd.s32 %s222, 1
      %p226 = scmp.eq.s32.totalorder %s20, 1
      %p227 = scmp.ne.s32.totalorder %s222, %s224
      %p228 = scmp.eq.s32.totalorder %s20, 0
      %p229 = por %p227, %p228
      %p230 = scmp.ne.s32.totalorder %s222, %s224
      %p231 = scmp.eq.s32.totalorder %s25, 1
      %p232 = por %p230, %p231
      %p233 = scmp.ne.s32.totalorder %s224, %s225
      %p234 = scmp.eq.s32.totalorder %s25, 0
      %p235 = por %p233, %p234
      %p236 = scmp.ne.s32.totalorder %s224, %s225
      %p237 = scmp.eq.s32.totalorder %s26, 1
      %p238 = por %p236, %p237
      %p240 = scmp.ne.s32.totalorder %s225, %s239
      %p241 = scmp.eq.s32.totalorder %s26, 0
      %p242 = por %p240, %p241
      %s244 = sadd.s32 %s243, 1
      %p247 = scmp.eq.s32.totalorder %s20, 1
      %p248 = scmp.ne.s32.totalorder %s243, %s245
      %p249 = scmp.eq.s32.totalorder %s20, 0
      %p250 = por %p248, %p249
      %p251 = scmp.ne.s32.totalorder %s243, %s245
      %p252 = scmp.eq.s32.totalorder %s25, 1
      %p253 = por %p251, %p252
      %p254 = scmp.ne.s32.totalorder %s245, %s246
      %p255 = scmp.eq.s32.totalorder %s25, 0
      %p256 = por %p254, %p255
      %p257 = scmp.ne.s32.totalorder %s245, %s246
      %p258 = scmp.eq.s32.totalorder %s26, 1
      %p259 = por %p257, %p258
      %p261 = scmp.ne.s32.totalorder %s246, %s260
      %p262 = scmp.eq.s32.totalorder %s26, 0
      %p263 = por %p261, %p262
      %s264 = ssub.s32 %s20, %s27
      %p265 = scmp.eq.s32.totalorder %s264, 0
      %s267 = sadd.s32 %s266, 1
      %s268 = scalar_select %p265, %s266, %s267
      %p271 = pneg %p265
      %p272 = scmp.eq.s32.totalorder %s20, 1
      %p273 = por %p271, %p272
      %p274 = scmp.ne.s32.totalorder %s266, %s269
      %p275 = scmp.eq.s32.totalorder %s20, 0
      %p276 = por %p274, %p275
      %p277 = scmp.ne.s32.totalorder %s266, %s269
      %p278 = scmp.eq.s32.totalorder %s25, 1
      %p279 = por %p277, %p278
      %p280 = scmp.ne.s32.totalorder %s269, %s270
      %p281 = scmp.eq.s32.totalorder %s25, 0
      %p282 = por %p280, %p281
      %p283 = scmp.ne.s32.totalorder %s269, %s270
      %p284 = scmp.eq.s32.totalorder %s26, 1
      %p285 = por %p283, %p284
      %p287 = scmp.ne.s32.totalorder %s270, %s286
      %p288 = scmp.eq.s32.totalorder %s26, 0
      %p289 = por %p287, %p288
      %p290 = scmp.le.s32.totalorder 1, %s20
      %p291 = scmp.lt.s32.totalorder %s20, 3
      %p292 = pnand %p290, %p291
      %p293 = pneg %p292
      // Predicated region
      $region9: #{tpu_custom_call.1} parent=5 // pred_check
        _
      $region10: #{tpu_custom_call.1} parent=5 // pred_check_branch
        %295 = sbr.rel (%p292) target = $region12
      $region11: #{tpu_custom_call.1} parent=5 // pred_region
        %s296 = ssub.s32 %s20, 1
        // Predicated region
        $region13: #{tpu_custom_call.1} parent=11 // pred_check
          %p297 = pneg %p67
        $region14: #{tpu_custom_call.1} parent=11 // pred_check_branch
          %299 = sbr.rel (%p297) target = $region16
        $region15: #{tpu_custom_call.1} parent=11 // pred_region
          _
        $region16: #{tpu_custom_call.1} parent=11 // pred_fallthru
          _
        // Predicated region
        $region17: #{tpu_custom_call.1} parent=11 // pred_check
          %p300 = pneg %p88
        $region18: #{tpu_custom_call.1} parent=11 // pred_check_branch
          %302 = sbr.rel (%p300) target = $region20
        $region19: #{tpu_custom_call.1} parent=11 // pred_region
          _
        $region20: #{tpu_custom_call.1} parent=11 // pred_fallthru
          _
        // Predicated region
        $region21: #{tpu_custom_call.1} parent=11 // pred_check
          %p303 = pneg %p109
        $region22: #{tpu_custom_call.1} parent=11 // pred_check_branch
          %305 = sbr.rel (%p303) target = $region24
        $region23: #{tpu_custom_call.1} parent=11 // pred_region
          _
        $region24: #{tpu_custom_call.1} parent=11 // pred_fallthru
          _
        // Predicated region
        $region25: #{tpu_custom_call.1} parent=11 // pred_check
          %p306 = pneg %p130
        $region26: #{tpu_custom_call.1} parent=11 // pred_check_branch
          %308 = sbr.rel (%p306) target = $region28
        $region27: #{tpu_custom_call.1} parent=11 // pred_region
          _
        $region28: #{tpu_custom_call.1} parent=11 // pred_fallthru
          _
        // Predicated region
        $region29: #{tpu_custom_call.1} parent=11 // pred_check
          %p309 = pneg %p151
        $region30: #{tpu_custom_call.1} parent=11 // pred_check_branch
          %311 = sbr.rel (%p309) target = $region32
        $region31: #{tpu_custom_call.1} parent=11 // pred_region
          _
        $region32: #{tpu_custom_call.1} parent=11 // pred_fallthru
          _
        // Predicated region
        $region33: #{tpu_custom_call.1} parent=11 // pred_check
          %p312 = pneg %p172
        $region34: #{tpu_custom_call.1} parent=11 // pred_check_branch
          %314 = sbr.rel (%p312) target = $region36
        $region35: #{tpu_custom_call.1} parent=11 // pred_region
          _
        $region36: #{tpu_custom_call.1} parent=11 // pred_fallthru
          _
        // Predicated region
        $region37: #{tpu_custom_call.1} parent=11 // pred_check
          %p315 = pneg %p193
        $region38: #{tpu_custom_call.1} parent=11 // pred_check_branch
          %317 = sbr.rel (%p315) target = $region40
        $region39: #{tpu_custom_call.1} parent=11 // pred_region
          _
        $region40: #{tpu_custom_call.1} parent=11 // pred_fallthru
          _
        // Predicated region
        $region41: #{tpu_custom_call.1} parent=11 // pred_check
          %p318 = pneg %p214
        $region42: #{tpu_custom_call.1} parent=11 // pred_check_branch
          %320 = sbr.rel (%p318) target = $region44
        $region43: #{tpu_custom_call.1} parent=11 // pred_region
          _
        $region44: #{tpu_custom_call.1} parent=11 // pred_fallthru
          _
        // Predicated region
        $region45: #{tpu_custom_call.1} parent=11 // pred_check
          %p321 = pneg %p235
        $region46: #{tpu_custom_call.1} parent=11 // pred_check_branch
          %323 = sbr.rel (%p321) target = $region48
        $region47: #{tpu_custom_call.1} parent=11 // pred_region
          _
        $region48: #{tpu_custom_call.1} parent=11 // pred_fallthru
          _
        // Predicated region
        $region49: #{tpu_custom_call.1} parent=11 // pred_check
          %p324 = pneg %p256
        $region50: #{tpu_custom_call.1} parent=11 // pred_check_branch
          %326 = sbr.rel (%p324) target = $region52
        $region51: #{tpu_custom_call.1} parent=11 // pred_region
          _
        $region52: #{tpu_custom_call.1} parent=11 // pred_fallthru
          _
      $region12: #{tpu_custom_call.1} parent=5 // pred_fallthru
        _
      %p327 = scmp.lt.s32.totalorder %s20, 2
      // Predicated region
      $region53: #{tpu_custom_call.1} parent=5 // pred_check
        %p328 = pneg %p327
      $region54: #{tpu_custom_call.1} parent=5 // pred_check_branch
        %330 = sbr.rel (%p328) target = $region56
      $region55: #{tpu_custom_call.1} parent=5 // pred_region
        // Predicated region
        $region57: #{tpu_custom_call.1} parent=55 // pred_check
          %p331 = pneg %p40
        $region58: #{tpu_custom_call.1} parent=55 // pred_check_branch
          %333 = sbr.rel (%p331) target = $region60
        $region59: #{tpu_custom_call.1} parent=55 // pred_region
          %s334 = smul.u32 8, %s20
          %p335 = scmp.lt.s32.totalorder %s334, 15
          %s336 = scalar_select %p335, %s334, 15
          %s337 = smul.addr %s336, 8
          %s338 = scalar_lea.vmem %s0, %s337
          %s339 = smul.u32 8, %s20
        $region60: #{tpu_custom_call.1} parent=55 // pred_fallthru
          _
      $region56: #{tpu_custom_call.1} parent=5 // pred_fallthru
        _
      %p340 = scmp.le.s32.totalorder 1, %s20
      %p341 = scmp.lt.s32.totalorder %s20, 3
      %p342 = pnand %p340, %p341
      %p343 = pneg %p342
      // Predicated region
      $region61: #{tpu_custom_call.1} parent=5 // pred_check
        _
      $region62: #{tpu_custom_call.1} parent=5 // pred_check_branch
        %345 = sbr.rel (%p342) target = $region64
      $region63: #{tpu_custom_call.1} parent=5 // pred_region
        %s346 = ssub.s32 %s20, 1
        %s347 = smul.u32 8, %s25
        %p348 = scmp.lt.s32.totalorder %s347, 15
        %s349 = scalar_select %p348, %s347, 15
        %s350 = smul.addr %s349, 8
        %s351 = scalar_lea.vmem %s0, %s350
        %p352 = pneg %p46
        %p353 = pneg %p43
        %p354 = pneg %p67
        %p355 = pneg %p64
        %p356 = pneg %p88
        %p357 = pneg %p85
        %p358 = pneg %p109
        %p359 = pneg %p106
        %p360 = pneg %p130
        %p361 = pneg %p127
        %p362 = pneg %p151
        %p363 = pneg %p148
        %p364 = pneg %p172
        %p365 = pneg %p169
        %p366 = pneg %p193
        %p367 = pneg %p190
        %p368 = pneg %p214
        %p369 = pneg %p211
        %p370 = pneg %p235
        %p371 = pneg %p232
        %p372 = pneg %p256
        %p373 = pneg %p253
        %p374 = pneg %p282
        %p375 = pneg %p279
        %s376 = sand.u32 %s269, 1
        %s377 = scalar_lea.sflag [#allocation4], %s376
        %s378 = sand.u32 %s269, 1
        %s379 = smul.addr %s378, 64
        %s380 = scalar_lea.vmem [#allocation3], %s379
        %s381 = smul.u32 8, %s25
        %p382 = scmp.lt.s32.totalorder %s381, 15
        %s383 = scalar_select %p382, %s381, 15
        %s384 = smul.addr %s383, 8
        %s385 = scalar_lea.vmem %s0, %s384
        %s386 = smul.u32 8, %s25
        %s387 = smul.u32 8, %s25
        %v389 = vld [vmem:[%s385] sm:$0xff]
        %v390 = vld [vmem:[%s385 + $0x8] sm:$0xff]
        %v391 = vld [vmem:[%s385 + $0x10] sm:$0xff]
        %v392 = vld [vmem:[%s385 + $0x18] sm:$0xff]
        %v393 = vld [vmem:[%s385 + $0x20] sm:$0xff]
        %v394 = vld [vmem:[%s385 + $0x28] sm:$0xff]
        %v395 = vld [vmem:[%s385 + $0x30] sm:$0xff]
        %v396 = vld [vmem:[%s385 + $0x38] sm:$0xff]
        %v397 = vpack.c.bf16 %v390, %v389
        %v398 = vpack.c.bf16 %v392, %v391
        %v399 = vpack.c.bf16 %v394, %v393
        %v400 = vpack.c.bf16 %v396, %v395
        %v401 = vld [vmem:[%s1] sm:$0xf]
        %v402 = vld [vmem:[%s1 + $0x4] sm:$0xf]
        %v403 = vld [vmem:[%s1 + $0x8] sm:$0xf]
        %v404 = vld [vmem:[%s1 + $0xc] sm:$0xf]
        %v405 = vld [vmem:[%s1 + $0x10] sm:$0xf]
        %v406 = vld [vmem:[%s1 + $0x14] sm:$0x1]
        %v407 = vld [vmem:[%s2] sm:$0x1]
        %v409 = vperm.slane %v407, 0
        %v417 = vunpack.c.l.b16 %v401
        %v418 = vunpack.c.l.b16 %v402
        %v419 = vunpack.c.l.b16 %v403
        %v420 = vunpack.c.l.b16 %v404
        %v421 = vunpack.c.l.b16 %v405
        %v422 = vunpack.c.l.b16 %v406
        %v423 = vpack.c.b16 %v418, %v417
        %v424 = vpack.c.b16 %v420, %v419
        %v425 = vpack.c.b16 %v422, %v421
        %vm428 = vcmask 343040
        %v430 = vsel %vm428, %v397, 0
        %v433 = vsel %vm428, %v398, 0
        %v436 = vsel %vm428, %v399, 0
        %v439 = vsel %vm428, %v400, 0
        %vm441 = vcmask 1044480
        %v443 = vsel %vm441, %v425, 0
        %445 = vmatpush.bf16.msra.mxu0 0
        %446 = vmatpush.bf16.msra.mxu0 0
        %447 = vmatpush.bf16.msra.mxu0 0
        %448 = vmatpush.bf16.msra.mxu0 0
        %449 = vmatpush.bf16.msra.mxu0 0
        %450 = vmatpush.bf16.msra.mxu0 %v443
        %451 = vmatpush.bf16.msra.mxu0 %v424
        %452 = vmatpush.bf16.msra.mxu0 %v423
        %453 = vmatmul.bf16.gmra.mxu0 %v430
        %v454 = vpop.f32.mrf.mxu0
        %v455 = vadd.f32 %v409, %v454
        %v456 = vpop.f32.mrf.mxu0
        %v457 = vadd.f32 %v409, %v456
        %458 = vmatmul.bf16.gmra.mxu0 %v433
        %v459 = vpop.f32.mrf.mxu0
        %v460 = vadd.f32 %v409, %v459
        %v461 = vpop.f32.mrf.mxu0
        %v462 = vadd.f32 %v409, %v461
        %463 = vmatmul.bf16.gmra.mxu0 %v436
        %v464 = vpop.f32.mrf.mxu0
        %v465 = vadd.f32 %v409, %v464
        %v466 = vpop.f32.mrf.mxu0
        %v467 = vadd.f32 %v409, %v466
        %468 = vmatmul.bf16.gmra.mxu0 %v439
        %v469 = vpop.f32.mrf.mxu0
        %v470 = vadd.f32 %v409, %v469
        %v471 = vpop.f32.mrf.mxu0
        %v472 = vadd.f32 %v409, %v471
        %473 = vdwg.mxu0
        %482 = vrot.lane.b32.xlu0 %v455, 96
        %v483 = vpop.permute.xlu0 %482
        %484 = vrot.lane.b32.xlu0 %v457, 96
        %v485 = vpop.permute.xlu0 %484
        %486 = vrot.lane.b32.xlu0 %v460, 96
        %v487 = vpop.permute.xlu0 %486
        %488 = vrot.lane.b32.xlu0 %v462, 96
        %v489 = vpop.permute.xlu0 %488
        %490 = vrot.lane.b32.xlu0 %v465, 96
        %v491 = vpop.permute.xlu0 %490
        %492 = vrot.lane.b32.xlu0 %v467, 96
        %v493 = vpop.permute.xlu0 %492
        %494 = vrot.lane.b32.xlu0 %v470, 96
        %v495 = vpop.permute.xlu0 %494
        %496 = vrot.lane.b32.xlu0 %v472, 96
        %v497 = vpop.permute.xlu0 %496
        %v506 = vmax.f32 %v455, %v483
        %v507 = vmax.f32 %v457, %v485
        %v508 = vmax.f32 %v460, %v487
        %v509 = vmax.f32 %v462, %v489
        %v510 = vmax.f32 %v465, %v491
        %v511 = vmax.f32 %v467, %v493
        %v512 = vmax.f32 %v470, %v495
        %v513 = vmax.f32 %v472, %v497
        %v514 = vmax.f32 %v506, 0.0
        %v515 = vmax.f32 %v507, 0.0
        %v516 = vmax.f32 %v508, 0.0
        %v517 = vmax.f32 %v509, 0.0
        %v518 = vmax.f32 %v510, 0.0
        %v519 = vmax.f32 %v511, 0.0
        %v520 = vmax.f32 %v512, 0.0
        %v521 = vmax.f32 %v513, 0.0
        %v522 = vpack.c.bf16 %v515, %v514
        %v523 = vpack.c.bf16 %v517, %v516
        %v524 = vpack.c.bf16 %v519, %v518
        %v525 = vpack.c.bf16 %v521, %v520
        %v526 = vld [vmem:[%s3] sm:$0xf]
        %v527 = vld [vmem:[%s3 + $0x4] sm:$0xf]
        %v528 = vld [vmem:[%s3 + $0x8] sm:$0xf]
        %v529 = vld [vmem:[%s3 + $0xc] sm:$0xf]
        %v530 = vld [vmem:[%s4] sm:$0x1]
        %v532 = vperm.slane %v530, 0
        %v538 = vunpack.c.l.b16 %v526
        %v539 = vunpack.c.l.b16 %v527
        %v540 = vunpack.c.l.b16 %v528
        %v541 = vunpack.c.l.b16 %v529
        %v542 = vpack.c.b16 %v539, %v538
        %v543 = vpack.c.b16 %v541, %v540
        %vm546 = vcmask 261120
        %v548 = vsel %vm546, %v522, 0
        %v551 = vsel %vm546, %v523, 0
        %v554 = vsel %vm546, %v524, 0
        %v557 = vsel %vm546, %v525, 0
        %559 = vmatpush.bf16.msra.mxu0 0
        %560 = vmatpush.bf16.msra.mxu0 0
        %561 = vmatpush.bf16.msra.mxu0 0
        %562 = vmatpush.bf16.msra.mxu0 0
        %563 = vmatpush.bf16.msra.mxu0 0
        %564 = vmatpush.bf16.msra.mxu0 0
        %565 = vmatpush.bf16.msra.mxu0 %v543
        %566 = vmatpush.bf16.msra.mxu0 %v542
        %567 = vmatmul.bf16.gmra.mxu0 %v548
        %v568 = vpop.f32.mrf.mxu0
        %v569 = vadd.f32 %v532, %v568
        %v570 = vpop.f32.mrf.mxu0
        %v571 = vadd.f32 %v532, %v570
        %572 = vmatmul.bf16.gmra.mxu0 %v551
        %v573 = vpop.f32.mrf.mxu0
        %v574 = vadd.f32 %v532, %v573
        %v575 = vpop.f32.mrf.mxu0
        %v576 = vadd.f32 %v532, %v575
        %577 = vmatmul.bf16.gmra.mxu0 %v554
        %v578 = vpop.f32.mrf.mxu0
        %v579 = vadd.f32 %v532, %v578
        %v580 = vpop.f32.mrf.mxu0
        %v581 = vadd.f32 %v532, %v580
        %582 = vmatmul.bf16.gmra.mxu0 %v557
        %v583 = vpop.f32.mrf.mxu0
        %v584 = vadd.f32 %v532, %v583
        %v585 = vpop.f32.mrf.mxu0
        %v586 = vadd.f32 %v532, %v585
        %587 = vdwg.mxu0
        %v588 = vld [vmem:[%s5] sm:$0xf]
        %v589 = vld [vmem:[%s5 + $0x4] sm:$0xf]
        %v590 = vld [vmem:[%s5 + $0x8] sm:$0xf]
        %v591 = vld [vmem:[%s5 + $0xc] sm:$0xf]
        %v592 = vld [vmem:[%s8] sm:$0xf]
        %v593 = vld [vmem:[%s8 + $0x4] sm:$0xf]
        %v594 = vld [vmem:[%s8 + $0x8] sm:$0xf]
        %v595 = vld [vmem:[%s8 + $0xc] sm:$0xf]
        %v596 = vld [vmem:[%s6] sm:$0xf]
        %v597 = vld [vmem:[%s6 + $0x4] sm:$0xf]
        %v598 = vld [vmem:[%s6 + $0x8] sm:$0xf]
        %v599 = vld [vmem:[%s6 + $0xc] sm:$0xf]
        %v600 = vld [vmem:[%s7] sm:$0x1]
        %v602 = vperm.slane %v600, 0
        %v608 = vunpack.c.l.b16 %v588
        %v609 = vunpack.c.l.b16 %v589
        %v610 = vunpack.c.l.b16 %v590
        %v611 = vunpack.c.l.b16 %v591
        %v612 = vpack.c.b16 %v609, %v608
        %v613 = vpack.c.b16 %v611, %v610
        %v617 = vsel %vm546, 0, 0
        %619 = vmatpush.bf16.msra.mxu0 0
        %620 = vmatpush.bf16.msra.mxu0 0
        %621 = vmatpush.bf16.msra.mxu0 0
        %622 = vmatpush.bf16.msra.mxu0 0
        %623 = vmatpush.bf16.msra.mxu0 0
        %624 = vmatpush.bf16.msra.mxu0 0
        %625 = vmatpush.bf16.msra.mxu0 %v613
        %626 = vmatpush.bf16.msra.mxu0 %v612
        %627 = vmatmul.bf16.gmra.mxu0 %v617
        %v628 = vpop.f32.mrf.mxu0
        %v629 = vadd.f32 0.0, %v628
        %v630 = vpop.f32.mrf.mxu0
        %631 = vdwg.mxu0
        %v632 = vadd.f32 %v569, %v629
        %v633 = vxor.u32 %v632, 2147483648
        %v634 = vmul.f32 %v633, 1.442695
        %v635 = vpow.pop %v634
        %v636 = vadd.f32 %v635, 1.0
        %v637 = vrcp.pop %v636
        %v638 = vmul.f32 %v636, %v637
        %v639 = vsub.f32 1.0, %v638
        %v640 = vmul.f32 %v637, %v639
        %v641 = vadd.f32 %v637, %v640
        %vm642 = vweird.f32 %v636
        %vm643 = vweird.f32 %v637
        %vm644 = vmor %vm642, %vm643
        %v645 = vsel %vm644, %v637, %v641
        %v646 = vand.u32 2147483647, %v636
        %vm647 = vcmp.eq.f32.partialorder %v646, 8.507059e+37
        %v648 = vand.u32 %v636, 2147483648
        %v649 = vor.u32 1.1754944e-38, %v648
        %v650 = vsel %vm647, %v649, %v645
        %v651 = vmul.f32 1.0, %v650
        %v652 = vtanh.pop %v632
        %v653 = vmul.f32 %v651, 0.0
        %655 = vrot.lane.b32.xlu0 %v652, 32
        %v656 = vpop.permute.xlu0 %655
        %v658 = vmul.f32 %v651, %v656
        %660 = vrot.lane.b32.xlu0 %v658, 32
        %v661 = vpop.permute.xlu0 %660
        %v663 = vadd.f32 %v653, %v661
        %v664 = vtanh.pop %v663
        %666 = vrot.lane.b32.xlu0 %v664, 32
        %v667 = vpop.permute.xlu0 %666
        %v669 = vmul.f32 %v651, %v667
        %v670 = vpack.c.bf16 %v669, %v669
        %672 = vrot.lane.b32.xlu0 %v670, 64
        %v673 = vpop.permute.xlu0 %672
        %v678 = vunpack.c.l.b16 %v596
        %v679 = vunpack.c.l.b16 %v597
        %v680 = vunpack.c.l.b16 %v598
        %v681 = vunpack.c.l.b16 %v599
        %v682 = vpack.c.b16 %v679, %v678
        %v683 = vpack.c.b16 %v681, %v680
        %v687 = vsel %vm546, %v673, 0
        %689 = vmatpush.bf16.msra.mxu0 0
        %690 = vmatpush.bf16.msra.mxu0 0
        %691 = vmatpush.bf16.msra.mxu0 0
        %692 = vmatpush.bf16.msra.mxu0 0
        %693 = vmatpush.bf16.msra.mxu0 0
        %694 = vmatpush.bf16.msra.mxu0 0
        %695 = vmatpush.bf16.msra.mxu0 %v683
        %696 = vmatpush.bf16.msra.mxu0 %v682
        %697 = vmatmul.bf16.gmra.mxu0 %v687
        %v698 = vpop.f32.mrf.mxu0
        %v699 = vadd.f32 %v602, %v698
        %v700 = vpop.f32.mrf.mxu0
        %701 = vdwg.mxu0
        %v706 = vunpack.c.l.b16 %v592
        %v707 = vunpack.c.l.b16 %v593
        %v708 = vunpack.c.l.b16 %v594
        %v709 = vunpack.c.l.b16 %v595
        %v710 = vpack.c.b16 %v707, %v706
        %v711 = vpack.c.b16 %v709, %v708
        %714 = vmatpush.bf16.msra.mxu0 0
        %715 = vmatpush.bf16.msra.mxu0 0
        %716 = vmatpush.bf16.msra.mxu0 0
        %717 = vmatpush.bf16.msra.mxu0 0
        %718 = vmatpush.bf16.msra.mxu0 0
        %719 = vmatpush.bf16.msra.mxu0 0
        %720 = vmatpush.bf16.msra.mxu0 %v711
        %721 = vmatpush.bf16.msra.mxu0 %v710
        %722 = vmatmul.bf16.gmra.mxu0 %v617
        %v723 = vpop.f32.mrf.mxu0
        %v724 = vadd.f32 0.0, %v723
        %v725 = vpop.f32.mrf.mxu0
        %726 = vdwg.mxu0
        %v727 = vadd.f32 %v699, %v724
        %v728 = vxor.u32 %v727, 2147483648
        %v729 = vmul.f32 %v728, 1.442695
        %v730 = vpow.pop %v729
        %v731 = vadd.f32 %v730, 1.0
        %v732 = vrcp.pop %v731
        %v733 = vmul.f32 %v731, %v732
        %v734 = vsub.f32 1.0, %v733
        %v735 = vmul.f32 %v732, %v734
        %v736 = vadd.f32 %v732, %v735
        %vm737 = vweird.f32 %v731
        %vm738 = vweird.f32 %v732
        %vm739 = vmor %vm737, %vm738
        %v740 = vsel %vm739, %v732, %v736
        %v741 = vand.u32 2147483647, %v731
        %vm742 = vcmp.eq.f32.partialorder %v741, 8.507059e+37
        %v743 = vand.u32 %v731, 2147483648
        %v744 = vor.u32 1.1754944e-38, %v743
        %v745 = vsel %vm742, %v744, %v740
        %v746 = vmul.f32 1.0, %v745
        %v747 = vtanh.pop %v727
        %v748 = vmul.f32 %v746, 0.0
        %750 = vrot.lane.b32.xlu0 %v747, 32
        %v751 = vpop.permute.xlu0 %750
        %v753 = vmul.f32 %v746, %v751
        %755 = vrot.lane.b32.xlu0 %v753, 32
        %v756 = vpop.permute.xlu0 %755
        %v758 = vadd.f32 %v748, %v756
        %v759 = vtanh.pop %v758
        %761 = vrot.lane.b32.xlu0 %v759, 32
        %v762 = vpop.permute.xlu0 %761
        %v764 = vmul.f32 %v746, %v762
        %766 = vrot.lane.b32.xlu0 %v764, 64
        %v767 = vpop.permute.xlu0 %766
        %769 = vst.msk [vmem:[#allocation2] sm:$0xff] %vm546, %v767
        %770 = vmatpush.bf16.msra.mxu0 0
        %771 = vmatpush.bf16.msra.mxu0 0
        %772 = vmatpush.bf16.msra.mxu0 0
        %773 = vmatpush.bf16.msra.mxu0 0
        %774 = vmatpush.bf16.msra.mxu0 0
        %775 = vmatpush.bf16.msra.mxu0 0
        %776 = vmatpush.bf16.msra.mxu0 %v613
        %777 = vmatpush.bf16.msra.mxu0 %v612
        %778 = vmatmul.bf16.gmra.mxu0 %v687
        %v779 = vpop.f32.mrf.mxu0
        %v780 = vadd.f32 0.0, %v779
        %v781 = vpop.f32.mrf.mxu0
        %782 = vdwg.mxu0
        %v783 = vadd.f32 %v571, %v780
        %v784 = vxor.u32 %v783, 2147483648
        %v785 = vmul.f32 %v784, 1.442695
        %v786 = vpow.pop %v785
        %v787 = vadd.f32 %v786, 1.0
        %v788 = vrcp.pop %v787
        %v789 = vmul.f32 %v787, %v788
        %v790 = vsub.f32 1.0, %v789
        %v791 = vmul.f32 %v788, %v790
        %v792 = vadd.f32 %v788, %v791
        %vm793 = vweird.f32 %v787
        %vm794 = vweird.f32 %v788
        %vm795 = vmor %vm793, %vm794
        %v796 = vsel %vm795, %v788, %v792
        %v797 = vand.u32 2147483647, %v787
        %vm798 = vcmp.eq.f32.partialorder %v797, 8.507059e+37
        %v799 = vand.u32 %v787, 2147483648
        %v800 = vor.u32 1.1754944e-38, %v799
        %v801 = vsel %vm798, %v800, %v796
        %v802 = vmul.f32 1.0, %v801
        %v803 = vtanh.pop %v783
        %v804 = vmul.f32 %v802, %v663
        %806 = vrot.lane.b32.xlu0 %v803, 32
        %v807 = vpop.permute.xlu0 %806
        %v809 = vmul.f32 %v802, %v807
        %811 = vrot.lane.b32.xlu0 %v809, 32
        %v812 = vpop.permute.xlu0 %811
        %v814 = vadd.f32 %v804, %v812
        %v815 = vtanh.pop %v814
        %817 = vrot.lane.b32.xlu0 %v815, 32
        %v818 = vpop.permute.xlu0 %817
        %v820 = vmul.f32 %v802, %v818
        %v821 = vpack.c.bf16 %v820, %v820
        %823 = vrot.lane.b32.xlu0 %v821, 64
        %v824 = vpop.permute.xlu0 %823
        %v826 = vsel %vm546, %v824, 0
        %828 = vmatpush.bf16.msra.mxu0 0
        %829 = vmatpush.bf16.msra.mxu0 0
        %830 = vmatpush.bf16.msra.mxu0 0
        %831 = vmatpush.bf16.msra.mxu0 0
        %832 = vmatpush.bf16.msra.mxu0 0
        %833 = vmatpush.bf16.msra.mxu0 0
        %834 = vmatpush.bf16.msra.mxu0 %v683
        %835 = vmatpush.bf16.msra.mxu0 %v682
        %836 = vmatmul.bf16.gmra.mxu0 %v826
        %v837 = vpop.f32.mrf.mxu0
        %v838 = vadd.f32 %v602, %v837
        %v839 = vpop.f32.mrf.mxu0
        %840 = vdwg.mxu0
        %v841 = vpack.c.bf16 %v764, %v764
        %843 = vrot.lane.b32.xlu0 %v841, 64
        %v844 = vpop.permute.xlu0 %843
        %v846 = vsel %vm546, %v844, 0
        %848 = vmatpush.bf16.msra.mxu0 0
        %849 = vmatpush.bf16.msra.mxu0 0
        %850 = vmatpush.bf16.msra.mxu0 0
        %851 = vmatpush.bf16.msra.mxu0 0
        %852 = vmatpush.bf16.msra.mxu0 0
        %853 = vmatpush.bf16.msra.mxu0 0
        %854 = vmatpush.bf16.msra.mxu0 %v711
        %855 = vmatpush.bf16.msra.mxu0 %v710
        %856 = vmatmul.bf16.gmra.mxu0 %v846
        %v857 = vpop.f32.mrf.mxu0
        %v858 = vadd.f32 0.0, %v857
        %v859 = vpop.f32.mrf.mxu0
        %860 = vdwg.mxu0
        %v861 = vadd.f32 %v838, %v858
        %v862 = vxor.u32 %v861, 2147483648
        %v863 = vmul.f32 %v862, 1.442695
        %v864 = vpow.pop %v863
        %v865 = vadd.f32 %v864, 1.0
        %v866 = vrcp.pop %v865
        %v867 = vmul.f32 %v865, %v866
        %v868 = vsub.f32 1.0, %v867
        %v869 = vmul.f32 %v866, %v868
        %v870 = vadd.f32 %v866, %v869
        %vm871 = vweird.f32 %v865
        %vm872 = vweird.f32 %v866
        %vm873 = vmor %vm871, %vm872
        %v874 = vsel %vm873, %v866, %v870
        %v875 = vand.u32 2147483647, %v865
        %vm876 = vcmp.eq.f32.partialorder %v875, 8.507059e+37
        %v877 = vand.u32 %v865, 2147483648
        %v878 = vor.u32 1.1754944e-38, %v877
        %v879 = vsel %vm876, %v878, %v874
        %v880 = vmul.f32 1.0, %v879
        %v881 = vtanh.pop %v861
        %v882 = vmul.f32 %v880, %v758
        %884 = vrot.lane.b32.xlu0 %v881, 32
        %v885 = vpop.permute.xlu0 %884
        %v887 = vmul.f32 %v880, %v885
        %889 = vrot.lane.b32.xlu0 %v887, 32
        %v890 = vpop.permute.xlu0 %889
        %v892 = vadd.f32 %v882, %v890
        %v893 = vtanh.pop %v892
        %895 = vrot.lane.b32.xlu0 %v893, 32
        %v896 = vpop.permute.xlu0 %895
        %v898 = vmul.f32 %v880, %v896
        %900 = vrot.lane.b32.xlu0 %v898, 64
        %v901 = vpop.permute.xlu0 %900
        %903 = vst.msk [vmem:[#allocation2 + $0x8] sm:$0xff] %vm546, %v901
        %904 = vmatpush.bf16.msra.mxu0 0
        %905 = vmatpush.bf16.msra.mxu0 0
        %906 = vmatpush.bf16.msra.mxu0 0
        %907 = vmatpush.bf16.msra.mxu0 0
        %908 = vmatpush.bf16.msra.mxu0 0
        %909 = vmatpush.bf16.msra.mxu0 0
        %910 = vmatpush.bf16.msra.mxu0 %v613
        %911 = vmatpush.bf16.msra.mxu0 %v612
        %912 = vmatmul.bf16.gmra.mxu0 %v826
        %v913 = vpop.f32.mrf.mxu0
        %v914 = vadd.f32 0.0, %v913
        %v915 = vpop.f32.mrf.mxu0
        %916 = vdwg.mxu0
        %v917 = vadd.f32 %v574, %v914
        %v918 = vxor.u32 %v917, 2147483648
        %v919 = vmul.f32 %v918, 1.442695
        %v920 = vpow.pop %v919
        %v921 = vadd.f32 %v920, 1.0
        %v922 = vrcp.pop %v921
        %v923 = vmul.f32 %v921, %v922
        %v924 = vsub.f32 1.0, %v923
        %v925 = vmul.f32 %v922, %v924
        %v926 = vadd.f32 %v922, %v925
        %vm927 = vweird.f32 %v921
        %vm928 = vweird.f32 %v922
        %vm929 = vmor %vm927, %vm928
        %v930 = vsel %vm929, %v922, %v926
        %v931 = vand.u32 2147483647, %v921
        %vm932 = vcmp.eq.f32.partialorder %v931, 8.507059e+37
        %v933 = vand.u32 %v921, 2147483648
        %v934 = vor.u32 1.1754944e-38, %v933
        %v935 = vsel %vm932, %v934, %v930
        %v936 = vmul.f32 1.0, %v935
        %v937 = vtanh.pop %v917
        %v938 = vmul.f32 %v936, %v814
        %940 = vrot.lane.b32.xlu0 %v937, 32
        %v941 = vpop.permute.xlu0 %940
        %v943 = vmul.f32 %v936, %v941
        %945 = vrot.lane.b32.xlu0 %v943, 32
        %v946 = vpop.permute.xlu0 %945
        %v948 = vadd.f32 %v938, %v946
        %v949 = vtanh.pop %v948
        %951 = vrot.lane.b32.xlu0 %v949, 32
        %v952 = vpop.permute.xlu0 %951
        %v954 = vmul.f32 %v936, %v952
        %v955 = vpack.c.bf16 %v954, %v954
        %957 = vrot.lane.b32.xlu0 %v955, 64
        %v958 = vpop.permute.xlu0 %957
        %v960 = vsel %vm546, %v958, 0
        %962 = vmatpush.bf16.msra.mxu0 0
        %963 = vmatpush.bf16.msra.mxu0 0
        %964 = vmatpush.bf16.msra.mxu0 0
        %965 = vmatpush.bf16.msra.mxu0 0
        %966 = vmatpush.bf16.msra.mxu0 0
        %967 = vmatpush.bf16.msra.mxu0 0
        %968 = vmatpush.bf16.msra.mxu0 %v683
        %969 = vmatpush.bf16.msra.mxu0 %v682
        %970 = vmatmul.bf16.gmra.mxu0 %v960
        %v971 = vpop.f32.mrf.mxu0
        %v972 = vadd.f32 %v602, %v971
        %v973 = vpop.f32.mrf.mxu0
        %974 = vdwg.mxu0
        %v975 = vpack.c.bf16 %v898, %v898
        %977 = vrot.lane.b32.xlu0 %v975, 64
        %v978 = vpop.permute.xlu0 %977
        %v980 = vsel %vm546, %v978, 0
        %982 = vmatpush.bf16.msra.mxu0 0
        %983 = vmatpush.bf16.msra.mxu0 0
        %984 = vmatpush.bf16.msra.mxu0 0
        %985 = vmatpush.bf16.msra.mxu0 0
        %986 = vmatpush.bf16.msra.mxu0 0
        %987 = vmatpush.bf16.msra.mxu0 0
        %988 = vmatpush.bf16.msra.mxu0 %v711
        %989 = vmatpush.bf16.msra.mxu0 %v710
        %990 = vmatmul.bf16.gmra.mxu0 %v980
        %v991 = vpop.f32.mrf.mxu0
        %v992 = vadd.f32 0.0, %v991
        %v993 = vpop.f32.mrf.mxu0
        %994 = vdwg.mxu0
        %v995 = vadd.f32 %v972, %v992
        %v996 = vxor.u32 %v995, 2147483648
        %v997 = vmul.f32 %v996, 1.442695
        %v998 = vpow.pop %v997
        %v999 = vadd.f32 %v998, 1.0
        %v1000 = vrcp.pop %v999
        %v1001 = vmul.f32 %v999, %v1000
        %v1002 = vsub.f32 1.0, %v1001
        %v1003 = vmul.f32 %v1000, %v1002
        %v1004 = vadd.f32 %v1000, %v1003
        %vm1005 = vweird.f32 %v999
        %vm1006 = vweird.f32 %v1000
        %vm1007 = vmor %vm1005, %vm1006
        %v1008 = vsel %vm1007, %v1000, %v1004
        %v1009 = vand.u32 2147483647, %v999
        %vm1010 = vcmp.eq.f32.partialorder %v1009, 8.507059e+37
        %v1011 = vand.u32 %v999, 2147483648
        %v1012 = vor.u32 1.1754944e-38, %v1011
        %v1013 = vsel %vm1010, %v1012, %v1008
        %v1014 = vmul.f32 1.0, %v1013
        %v1015 = vtanh.pop %v995
        %v1016 = vmul.f32 %v1014, %v892
        %1018 = vrot.lane.b32.xlu0 %v1015, 32
        %v1019 = vpop.permute.xlu0 %1018
        %v1021 = vmul.f32 %v1014, %v1019
        %1023 = vrot.lane.b32.xlu0 %v1021, 32
        %v1024 = vpop.permute.xlu0 %1023
        %v1026 = vadd.f32 %v1016, %v1024
        %v1027 = vtanh.pop %v1026
        %1029 = vrot.lane.b32.xlu0 %v1027, 32
        %v1030 = vpop.permute.xlu0 %1029
        %v1032 = vmul.f32 %v1014, %v1030
        %1034 = vrot.lane.b32.xlu0 %v1032, 64
        %v1035 = vpop.permute.xlu0 %1034
        %1037 = vst.msk [vmem:[#allocation2 + $0x10] sm:$0xff] %vm546, %v1035
        %1038 = vmatpush.bf16.msra.mxu0 0
        %1039 = vmatpush.bf16.msra.mxu0 0
        %1040 = vmatpush.bf16.msra.mxu0 0
        %1041 = vmatpush.bf16.msra.mxu0 0
        %1042 = vmatpush.bf16.msra.mxu0 0
        %1043 = vmatpush.bf16.msra.mxu0 0
        %1044 = vmatpush.bf16.msra.mxu0 %v613
        %1045 = vmatpush.bf16.msra.mxu0 %v612
        %1046 = vmatmul.bf16.gmra.mxu0 %v960
        %v1047 = vpop.f32.mrf.mxu0
        %v1048 = vadd.f32 0.0, %v1047
        %v1049 = vpop.f32.mrf.mxu0
        %1050 = vdwg.mxu0
        %v1051 = vadd.f32 %v576, %v1048
        %v1052 = vxor.u32 %v1051, 2147483648
        %v1053 = vmul.f32 %v1052, 1.442695
        %v1054 = vpow.pop %v1053
        %v1055 = vadd.f32 %v1054, 1.0
        %v1056 = vrcp.pop %v1055
        %v1057 = vmul.f32 %v1055, %v1056
        %v1058 = vsub.f32 1.0, %v1057
        %v1059 = vmul.f32 %v1056, %v1058
        %v1060 = vadd.f32 %v1056, %v1059
        %vm1061 = vweird.f32 %v1055
        %vm1062 = vweird.f32 %v1056
        %vm1063 = vmor %vm1061, %vm1062
        %v1064 = vsel %vm1063, %v1056, %v1060
        %v1065 = vand.u32 2147483647, %v1055
        %vm1066 = vcmp.eq.f32.partialorder %v1065, 8.507059e+37
        %v1067 = vand.u32 %v1055, 2147483648
        %v1068 = vor.u32 1.1754944e-38, %v1067
        %v1069 = vsel %vm1066, %v1068, %v1064
        %v1070 = vmul.f32 1.0, %v1069
        %v1071 = vtanh.pop %v1051
        %v1072 = vmul.f32 %v1070, %v948
        %1074 = vrot.lane.b32.xlu0 %v1071, 32
        %v1075 = vpop.permute.xlu0 %1074
        %v1077 = vmul.f32 %v1070, %v1075
        %1079 = vrot.lane.b32.xlu0 %v1077, 32
        %v1080 = vpop.permute.xlu0 %1079
        %v1082 = vadd.f32 %v1072, %v1080
        %v1083 = vtanh.pop %v1082
        %1085 = vrot.lane.b32.xlu0 %v1083, 32
        %v1086 = vpop.permute.xlu0 %1085
        %v1088 = vmul.f32 %v1070, %v1086
        %v1089 = vpack.c.bf16 %v1088, %v1088
        %1091 = vrot.lane.b32.xlu0 %v1089, 64
        %v1092 = vpop.permute.xlu0 %1091
        %v1094 = vsel %vm546, %v1092, 0
        %1096 = vmatpush.bf16.msra.mxu0 0
        %1097 = vmatpush.bf16.msra.mxu0 0
        %1098 = vmatpush.bf16.msra.mxu0 0
        %1099 = vmatpush.bf16.msra.mxu0 0
        %1100 = vmatpush.bf16.msra.mxu0 0
        %1101 = vmatpush.bf16.msra.mxu0 0
        %1102 = vmatpush.bf16.msra.mxu0 %v683
        %1103 = vmatpush.bf16.msra.mxu0 %v682
        %1104 = vmatmul.bf16.gmra.mxu0 %v1094
        %v1105 = vpop.f32.mrf.mxu0
        %v1106 = vadd.f32 %v602, %v1105
        %v1107 = vpop.f32.mrf.mxu0
        %1108 = vdwg.mxu0
        %v1109 = vpack.c.bf16 %v1032, %v1032
        %1111 = vrot.lane.b32.xlu0 %v1109, 64
        %v1112 = vpop.permute.xlu0 %1111
        %v1114 = vsel %vm546, %v1112, 0
        %1116 = vmatpush.bf16.msra.mxu0 0
        %1117 = vmatpush.bf16.msra.mxu0 0
        %1118 = vmatpush.bf16.msra.mxu0 0
        %1119 = vmatpush.bf16.msra.mxu0 0
        %1120 = vmatpush.bf16.msra.mxu0 0
        %1121 = vmatpush.bf16.msra.mxu0 0
        %1122 = vmatpush.bf16.msra.mxu0 %v711
        %1123 = vmatpush.bf16.msra.mxu0 %v710
        %1124 = vmatmul.bf16.gmra.mxu0 %v1114
        %v1125 = vpop.f32.mrf.mxu0
        %v1126 = vadd.f32 0.0, %v1125
        %v1127 = vpop.f32.mrf.mxu0
        %1128 = vdwg.mxu0
        %v1129 = vadd.f32 %v1106, %v1126
        %v1130 = vxor.u32 %v1129, 2147483648
        %v1131 = vmul.f32 %v1130, 1.442695
        %v1132 = vpow.pop %v1131
        %v1133 = vadd.f32 %v1132, 1.0
        %v1134 = vrcp.pop %v1133
        %v1135 = vmul.f32 %v1133, %v1134
        %v1136 = vsub.f32 1.0, %v1135
        %v1137 = vmul.f32 %v1134, %v1136
        %v1138 = vadd.f32 %v1134, %v1137
        %vm1139 = vweird.f32 %v1133
        %vm1140 = vweird.f32 %v1134
        %vm1141 = vmor %vm1139, %vm1140
        %v1142 = vsel %vm1141, %v1134, %v1138
        %v1143 = vand.u32 2147483647, %v1133
        %vm1144 = vcmp.eq.f32.partialorder %v1143, 8.507059e+37
        %v1145 = vand.u32 %v1133, 2147483648
        %v1146 = vor.u32 1.1754944e-38, %v1145
        %v1147 = vsel %vm1144, %v1146, %v1142
        %v1148 = vmul.f32 1.0, %v1147
        %v1149 = vtanh.pop %v1129
        %v1150 = vmul.f32 %v1148, %v1026
        %1152 = vrot.lane.b32.xlu0 %v1149, 32
        %v1153 = vpop.permute.xlu0 %1152
        %v1155 = vmul.f32 %v1148, %v1153
        %1157 = vrot.lane.b32.xlu0 %v1155, 32
        %v1158 = vpop.permute.xlu0 %1157
        %v1160 = vadd.f32 %v1150, %v1158
        %v1161 = vtanh.pop %v1160
        %1163 = vrot.lane.b32.xlu0 %v1161, 32
        %v1164 = vpop.permute.xlu0 %1163
        %v1166 = vmul.f32 %v1148, %v1164
        %1168 = vrot.lane.b32.xlu0 %v1166, 64
        %v1169 = vpop.permute.xlu0 %1168
        %1171 = vst.msk [vmem:[#allocation2 + $0x18] sm:$0xff] %vm546, %v1169
        %1172 = vmatpush.bf16.msra.mxu0 0
        %1173 = vmatpush.bf16.msra.mxu0 0
        %1174 = vmatpush.bf16.msra.mxu0 0
        %1175 = vmatpush.bf16.msra.mxu0 0
        %1176 = vmatpush.bf16.msra.mxu0 0
        %1177 = vmatpush.bf16.msra.mxu0 0
        %1178 = vmatpush.bf16.msra.mxu0 %v613
        %1179 = vmatpush.bf16.msra.mxu0 %v612
        %1180 = vmatmul.bf16.gmra.mxu0 %v1094
        %v1181 = vpop.f32.mrf.mxu0
        %v1182 = vadd.f32 0.0, %v1181
        %v1183 = vpop.f32.mrf.mxu0
        %1184 = vdwg.mxu0
        %v1185 = vadd.f32 %v579, %v1182
        %v1186 = vxor.u32 %v1185, 2147483648
        %v1187 = vmul.f32 %v1186, 1.442695
        %v1188 = vpow.pop %v1187
        %v1189 = vadd.f32 %v1188, 1.0
        %v1190 = vrcp.pop %v1189
        %v1191 = vmul.f32 %v1189, %v1190
        %v1192 = vsub.f32 1.0, %v1191
        %v1193 = vmul.f32 %v1190, %v1192
        %v1194 = vadd.f32 %v1190, %v1193
        %vm1195 = vweird.f32 %v1189
        %vm1196 = vweird.f32 %v1190
        %vm1197 = vmor %vm1195, %vm1196
        %v1198 = vsel %vm1197, %v1190, %v1194
        %v1199 = vand.u32 2147483647, %v1189
        %vm1200 = vcmp.eq.f32.partialorder %v1199, 8.507059e+37
        %v1201 = vand.u32 %v1189, 2147483648
        %v1202 = vor.u32 1.1754944e-38, %v1201
        %v1203 = vsel %vm1200, %v1202, %v1198
        %v1204 = vmul.f32 1.0, %v1203
        %v1205 = vtanh.pop %v1185
        %v1206 = vmul.f32 %v1204, %v1082
        %1208 = vrot.lane.b32.xlu0 %v1205, 32
        %v1209 = vpop.permute.xlu0 %1208
        %v1211 = vmul.f32 %v1204, %v1209
        %1213 = vrot.lane.b32.xlu0 %v1211, 32
        %v1214 = vpop.permute.xlu0 %1213
        %v1216 = vadd.f32 %v1206, %v1214
        %v1217 = vtanh.pop %v1216
        %1219 = vrot.lane.b32.xlu0 %v1217, 32
        %v1220 = vpop.permute.xlu0 %1219
        %v1222 = vmul.f32 %v1204, %v1220
        %v1223 = vpack.c.bf16 %v1222, %v1222
        %1225 = vrot.lane.b32.xlu0 %v1223, 64
        %v1226 = vpop.permute.xlu0 %1225
        %v1228 = vsel %vm546, %v1226, 0
        %1230 = vmatpush.bf16.msra.mxu0 0
        %1231 = vmatpush.bf16.msra.mxu0 0
        %1232 = vmatpush.bf16.msra.mxu0 0
        %1233 = vmatpush.bf16.msra.mxu0 0
        %1234 = vmatpush.bf16.msra.mxu0 0
        %1235 = vmatpush.bf16.msra.mxu0 0
        %1236 = vmatpush.bf16.msra.mxu0 %v683
        %1237 = vmatpush.bf16.msra.mxu0 %v682
        %1238 = vmatmul.bf16.gmra.mxu0 %v1228
        %v1239 = vpop.f32.mrf.mxu0
        %v1240 = vadd.f32 %v602, %v1239
        %v1241 = vpop.f32.mrf.mxu0
        %1242 = vdwg.mxu0
        %v1243 = vpack.c.bf16 %v1166, %v1166
        %1245 = vrot.lane.b32.xlu0 %v1243, 64
        %v1246 = vpop.permute.xlu0 %1245
        %v1248 = vsel %vm546, %v1246, 0
        %1250 = vmatpush.bf16.msra.mxu0 0
        %1251 = vmatpush.bf16.msra.mxu0 0
        %1252 = vmatpush.bf16.msra.mxu0 0
        %1253 = vmatpush.bf16.msra.mxu0 0
        %1254 = vmatpush.bf16.msra.mxu0 0
        %1255 = vmatpush.bf16.msra.mxu0 0
        %1256 = vmatpush.bf16.msra.mxu0 %v711
        %1257 = vmatpush.bf16.msra.mxu0 %v710
        %1258 = vmatmul.bf16.gmra.mxu0 %v1248
        %v1259 = vpop.f32.mrf.mxu0
        %v1260 = vadd.f32 0.0, %v1259
        %v1261 = vpop.f32.mrf.mxu0
        %1262 = vdwg.mxu0
        %v1263 = vadd.f32 %v1240, %v1260
        %v1264 = vxor.u32 %v1263, 2147483648
        %v1265 = vmul.f32 %v1264, 1.442695
        %v1266 = vpow.pop %v1265
        %v1267 = vadd.f32 %v1266, 1.0
        %v1268 = vrcp.pop %v1267
        %v1269 = vmul.f32 %v1267, %v1268
        %v1270 = vsub.f32 1.0, %v1269
        %v1271 = vmul.f32 %v1268, %v1270
        %v1272 = vadd.f32 %v1268, %v1271
        %vm1273 = vweird.f32 %v1267
        %vm1274 = vweird.f32 %v1268
        %vm1275 = vmor %vm1273, %vm1274
        %v1276 = vsel %vm1275, %v1268, %v1272
        %v1277 = vand.u32 2147483647, %v1267
        %vm1278 = vcmp.eq.f32.partialorder %v1277, 8.507059e+37
        %v1279 = vand.u32 %v1267, 2147483648
        %v1280 = vor.u32 1.1754944e-38, %v1279
        %v1281 = vsel %vm1278, %v1280, %v1276
        %v1282 = vmul.f32 1.0, %v1281
        %v1283 = vtanh.pop %v1263
        %v1284 = vmul.f32 %v1282, %v1160
        %1286 = vrot.lane.b32.xlu0 %v1283, 32
        %v1287 = vpop.permute.xlu0 %1286
        %v1289 = vmul.f32 %v1282, %v1287
        %1291 = vrot.lane.b32.xlu0 %v1289, 32
        %v1292 = vpop.permute.xlu0 %1291
        %v1294 = vadd.f32 %v1284, %v1292
        %v1295 = vtanh.pop %v1294
        %1297 = vrot.lane.b32.xlu0 %v1295, 32
        %v1298 = vpop.permute.xlu0 %1297
        %v1300 = vmul.f32 %v1282, %v1298
        %1302 = vrot.lane.b32.xlu0 %v1300, 64
        %v1303 = vpop.permute.xlu0 %1302
        %1305 = vst.msk [vmem:[#allocation2 + $0x20] sm:$0xff] %vm546, %v1303
        %1306 = vmatpush.bf16.msra.mxu0 0
        %1307 = vmatpush.bf16.msra.mxu0 0
        %1308 = vmatpush.bf16.msra.mxu0 0
        %1309 = vmatpush.bf16.msra.mxu0 0
        %1310 = vmatpush.bf16.msra.mxu0 0
        %1311 = vmatpush.bf16.msra.mxu0 0
        %1312 = vmatpush.bf16.msra.mxu0 %v613
        %1313 = vmatpush.bf16.msra.mxu0 %v612
        %1314 = vmatmul.bf16.gmra.mxu0 %v1228
        %v1315 = vpop.f32.mrf.mxu0
        %v1316 = vadd.f32 0.0, %v1315
        %v1317 = vpop.f32.mrf.mxu0
        %1318 = vdwg.mxu0
        %v1319 = vadd.f32 %v581, %v1316
        %v1320 = vxor.u32 %v1319, 2147483648
        %v1321 = vmul.f32 %v1320, 1.442695
        %v1322 = vpow.pop %v1321
        %v1323 = vadd.f32 %v1322, 1.0
        %v1324 = vrcp.pop %v1323
        %v1325 = vmul.f32 %v1323, %v1324
        %v1326 = vsub.f32 1.0, %v1325
        %v1327 = vmul.f32 %v1324, %v1326
        %v1328 = vadd.f32 %v1324, %v1327
        %vm1329 = vweird.f32 %v1323
        %vm1330 = vweird.f32 %v1324
        %vm1331 = vmor %vm1329, %vm1330
        %v1332 = vsel %vm1331, %v1324, %v1328
        %v1333 = vand.u32 2147483647, %v1323
        %vm1334 = vcmp.eq.f32.partialorder %v1333, 8.507059e+37
        %v1335 = vand.u32 %v1323, 2147483648
        %v1336 = vor.u32 1.1754944e-38, %v1335
        %v1337 = vsel %vm1334, %v1336, %v1332
        %v1338 = vmul.f32 1.0, %v1337
        %v1339 = vtanh.pop %v1319
        %v1340 = vmul.f32 %v1338, %v1216
        %1342 = vrot.lane.b32.xlu0 %v1339, 32
        %v1343 = vpop.permute.xlu0 %1342
        %v1345 = vmul.f32 %v1338, %v1343
        %1347 = vrot.lane.b32.xlu0 %v1345, 32
        %v1348 = vpop.permute.xlu0 %1347
        %v1350 = vadd.f32 %v1340, %v1348
        %v1351 = vtanh.pop %v1350
        %1353 = vrot.lane.b32.xlu0 %v1351, 32
        %v1354 = vpop.permute.xlu0 %1353
        %v1356 = vmul.f32 %v1338, %v1354
        %v1357 = vpack.c.bf16 %v1356, %v1356
        %1359 = vrot.lane.b32.xlu0 %v1357, 64
        %v1360 = vpop.permute.xlu0 %1359
        %v1362 = vsel %vm546, %v1360, 0
        %1364 = vmatpush.bf16.msra.mxu0 0
        %1365 = vmatpush.bf16.msra.mxu0 0
        %1366 = vmatpush.bf16.msra.mxu0 0
        %1367 = vmatpush.bf16.msra.mxu0 0
        %1368 = vmatpush.bf16.msra.mxu0 0
        %1369 = vmatpush.bf16.msra.mxu0 0
        %1370 = vmatpush.bf16.msra.mxu0 %v683
        %1371 = vmatpush.bf16.msra.mxu0 %v682
        %1372 = vmatmul.bf16.gmra.mxu0 %v1362
        %v1373 = vpop.f32.mrf.mxu0
        %v1374 = vadd.f32 %v602, %v1373
        %v1375 = vpop.f32.mrf.mxu0
        %1376 = vdwg.mxu0
        %v1377 = vpack.c.bf16 %v1300, %v1300
        %1379 = vrot.lane.b32.xlu0 %v1377, 64
        %v1380 = vpop.permute.xlu0 %1379
        %v1382 = vsel %vm546, %v1380, 0
        %1384 = vmatpush.bf16.msra.mxu0 0
        %1385 = vmatpush.bf16.msra.mxu0 0
        %1386 = vmatpush.bf16.msra.mxu0 0
        %1387 = vmatpush.bf16.msra.mxu0 0
        %1388 = vmatpush.bf16.msra.mxu0 0
        %1389 = vmatpush.bf16.msra.mxu0 0
        %1390 = vmatpush.bf16.msra.mxu0 %v711
        %1391 = vmatpush.bf16.msra.mxu0 %v710
        %1392 = vmatmul.bf16.gmra.mxu0 %v1382
        %v1393 = vpop.f32.mrf.mxu0
        %v1394 = vadd.f32 0.0, %v1393
        %v1395 = vpop.f32.mrf.mxu0
        %1396 = vdwg.mxu0
        %v1397 = vadd.f32 %v1374, %v1394
        %v1398 = vxor.u32 %v1397, 2147483648
        %v1399 = vmul.f32 %v1398, 1.442695
        %v1400 = vpow.pop %v1399
        %v1401 = vadd.f32 %v1400, 1.0
        %v1402 = vrcp.pop %v1401
        %v1403 = vmul.f32 %v1401, %v1402
        %v1404 = vsub.f32 1.0, %v1403
        %v1405 = vmul.f32 %v1402, %v1404
        %v1406 = vadd.f32 %v1402, %v1405
        %vm1407 = vweird.f32 %v1401
        %vm1408 = vweird.f32 %v1402
        %vm1409 = vmor %vm1407, %vm1408
        %v1410 = vsel %vm1409, %v1402, %v1406
        %v1411 = vand.u32 2147483647, %v1401
        %vm1412 = vcmp.eq.f32.partialorder %v1411, 8.507059e+37
        %v1413 = vand.u32 %v1401, 2147483648
        %v1414 = vor.u32 1.1754944e-38, %v1413
        %v1415 = vsel %vm1412, %v1414, %v1410
        %v1416 = vmul.f32 1.0, %v1415
        %v1417 = vtanh.pop %v1397
        %v1418 = vmul.f32 %v1416, %v1294
        %1420 = vrot.lane.b32.xlu0 %v1417, 32
        %v1421 = vpop.permute.xlu0 %1420
        %v1423 = vmul.f32 %v1416, %v1421
        %1425 = vrot.lane.b32.xlu0 %v1423, 32
        %v1426 = vpop.permute.xlu0 %1425
        %v1428 = vadd.f32 %v1418, %v1426
        %v1429 = vtanh.pop %v1428
        %1431 = vrot.lane.b32.xlu0 %v1429, 32
        %v1432 = vpop.permute.xlu0 %1431
        %v1434 = vmul.f32 %v1416, %v1432
        %1436 = vrot.lane.b32.xlu0 %v1434, 64
        %v1437 = vpop.permute.xlu0 %1436
        %1439 = vst.msk [vmem:[#allocation2 + $0x28] sm:$0xff] %vm546, %v1437
        %1440 = vmatpush.bf16.msra.mxu0 0
        %1441 = vmatpush.bf16.msra.mxu0 0
        %1442 = vmatpush.bf16.msra.mxu0 0
        %1443 = vmatpush.bf16.msra.mxu0 0
        %1444 = vmatpush.bf16.msra.mxu0 0
        %1445 = vmatpush.bf16.msra.mxu0 0
        %1446 = vmatpush.bf16.msra.mxu0 %v613
        %1447 = vmatpush.bf16.msra.mxu0 %v612
        %1448 = vmatmul.bf16.gmra.mxu0 %v1362
        %v1449 = vpop.f32.mrf.mxu0
        %v1450 = vadd.f32 0.0, %v1449
        %v1451 = vpop.f32.mrf.mxu0
        %1452 = vdwg.mxu0
        %v1453 = vadd.f32 %v584, %v1450
        %v1454 = vxor.u32 %v1453, 2147483648
        %v1455 = vmul.f32 %v1454, 1.442695
        %v1456 = vpow.pop %v1455
        %v1457 = vadd.f32 %v1456, 1.0
        %v1458 = vrcp.pop %v1457
        %v1459 = vmul.f32 %v1457, %v1458
        %v1460 = vsub.f32 1.0, %v1459
        %v1461 = vmul.f32 %v1458, %v1460
        %v1462 = vadd.f32 %v1458, %v1461
        %vm1463 = vweird.f32 %v1457
        %vm1464 = vweird.f32 %v1458
        %vm1465 = vmor %vm1463, %vm1464
        %v1466 = vsel %vm1465, %v1458, %v1462
        %v1467 = vand.u32 2147483647, %v1457
        %vm1468 = vcmp.eq.f32.partialorder %v1467, 8.507059e+37
        %v1469 = vand.u32 %v1457, 2147483648
        %v1470 = vor.u32 1.1754944e-38, %v1469
        %v1471 = vsel %vm1468, %v1470, %v1466
        %v1472 = vmul.f32 1.0, %v1471
        %v1473 = vtanh.pop %v1453
        %v1474 = vmul.f32 %v1472, %v1350
        %1476 = vrot.lane.b32.xlu0 %v1473, 32
        %v1477 = vpop.permute.xlu0 %1476
        %v1479 = vmul.f32 %v1472, %v1477
        %1481 = vrot.lane.b32.xlu0 %v1479, 32
        %v1482 = vpop.permute.xlu0 %1481
        %v1484 = vadd.f32 %v1474, %v1482
        %v1485 = vtanh.pop %v1484
        %1487 = vrot.lane.b32.xlu0 %v1485, 32
        %v1488 = vpop.permute.xlu0 %1487
        %v1490 = vmul.f32 %v1472, %v1488
        %v1491 = vpack.c.bf16 %v1490, %v1490
        %1493 = vrot.lane.b32.xlu0 %v1491, 64
        %v1494 = vpop.permute.xlu0 %1493
        %v1496 = vsel %vm546, %v1494, 0
        %1498 = vmatpush.bf16.msra.mxu0 0
        %1499 = vmatpush.bf16.msra.mxu0 0
        %1500 = vmatpush.bf16.msra.mxu0 0
        %1501 = vmatpush.bf16.msra.mxu0 0
        %1502 = vmatpush.bf16.msra.mxu0 0
        %1503 = vmatpush.bf16.msra.mxu0 0
        %1504 = vmatpush.bf16.msra.mxu0 %v683
        %1505 = vmatpush.bf16.msra.mxu0 %v682
        %1506 = vmatmul.bf16.gmra.mxu0 %v1496
        %v1507 = vpop.f32.mrf.mxu0
        %v1508 = vadd.f32 %v602, %v1507
        %v1509 = vpop.f32.mrf.mxu0
        %1510 = vdwg.mxu0
        %v1511 = vpack.c.bf16 %v1434, %v1434
        %1513 = vrot.lane.b32.xlu0 %v1511, 64
        %v1514 = vpop.permute.xlu0 %1513
        %v1516 = vsel %vm546, %v1514, 0
        %1518 = vmatpush.bf16.msra.mxu0 0
        %1519 = vmatpush.bf16.msra.mxu0 0
        %1520 = vmatpush.bf16.msra.mxu0 0
        %1521 = vmatpush.bf16.msra.mxu0 0
        %1522 = vmatpush.bf16.msra.mxu0 0
        %1523 = vmatpush.bf16.msra.mxu0 0
        %1524 = vmatpush.bf16.msra.mxu0 %v711
        %1525 = vmatpush.bf16.msra.mxu0 %v710
        %1526 = vmatmul.bf16.gmra.mxu0 %v1516
        %v1527 = vpop.f32.mrf.mxu0
        %v1528 = vadd.f32 0.0, %v1527
        %v1529 = vpop.f32.mrf.mxu0
        %1530 = vdwg.mxu0
        %v1531 = vadd.f32 %v1508, %v1528
        %v1532 = vxor.u32 %v1531, 2147483648
        %v1533 = vmul.f32 %v1532, 1.442695
        %v1534 = vpow.pop %v1533
        %v1535 = vadd.f32 %v1534, 1.0
        %v1536 = vrcp.pop %v1535
        %v1537 = vmul.f32 %v1535, %v1536
        %v1538 = vsub.f32 1.0, %v1537
        %v1539 = vmul.f32 %v1536, %v1538
        %v1540 = vadd.f32 %v1536, %v1539
        %vm1541 = vweird.f32 %v1535
        %vm1542 = vweird.f32 %v1536
        %vm1543 = vmor %vm1541, %vm1542
        %v1544 = vsel %vm1543, %v1536, %v1540
        %v1545 = vand.u32 2147483647, %v1535
        %vm1546 = vcmp.eq.f32.partialorder %v1545, 8.507059e+37
        %v1547 = vand.u32 %v1535, 2147483648
        %v1548 = vor.u32 1.1754944e-38, %v1547
        %v1549 = vsel %vm1546, %v1548, %v1544
        %v1550 = vmul.f32 1.0, %v1549
        %v1551 = vtanh.pop %v1531
        %v1552 = vmul.f32 %v1550, %v1428
        %1554 = vrot.lane.b32.xlu0 %v1551, 32
        %v1555 = vpop.permute.xlu0 %1554
        %v1557 = vmul.f32 %v1550, %v1555
        %1559 = vrot.lane.b32.xlu0 %v1557, 32
        %v1560 = vpop.permute.xlu0 %1559
        %v1562 = vadd.f32 %v1552, %v1560
        %v1563 = vtanh.pop %v1562
        %1565 = vrot.lane.b32.xlu0 %v1563, 32
        %v1566 = vpop.permute.xlu0 %1565
        %v1568 = vmul.f32 %v1550, %v1566
        %1570 = vrot.lane.b32.xlu0 %v1568, 64
        %v1571 = vpop.permute.xlu0 %1570
        %1573 = vst.msk [vmem:[#allocation2 + $0x30] sm:$0xff] %vm546, %v1571
        %1574 = vmatpush.bf16.msra.mxu0 0
        %1575 = vmatpush.bf16.msra.mxu0 0
        %1576 = vmatpush.bf16.msra.mxu0 0
        %1577 = vmatpush.bf16.msra.mxu0 0
        %1578 = vmatpush.bf16.msra.mxu0 0
        %1579 = vmatpush.bf16.msra.mxu0 0
        %1580 = vmatpush.bf16.msra.mxu0 %v613
        %1581 = vmatpush.bf16.msra.mxu0 %v612
        %1582 = vmatmul.bf16.gmra.mxu0 %v1496
        %v1583 = vpop.f32.mrf.mxu0
        %v1584 = vadd.f32 0.0, %v1583
        %v1585 = vpop.f32.mrf.mxu0
        %1586 = vdwg.mxu0
        %v1587 = vadd.f32 %v586, %v1584
        %v1588 = vxor.u32 %v1587, 2147483648
        %v1589 = vmul.f32 %v1588, 1.442695
        %v1590 = vpow.pop %v1589
        %v1591 = vadd.f32 %v1590, 1.0
        %v1592 = vrcp.pop %v1591
        %v1593 = vmul.f32 %v1591, %v1592
        %v1594 = vsub.f32 1.0, %v1593
        %v1595 = vmul.f32 %v1592, %v1594
        %v1596 = vadd.f32 %v1592, %v1595
        %vm1597 = vweird.f32 %v1591
        %vm1598 = vweird.f32 %v1592
        %vm1599 = vmor %vm1597, %vm1598
        %v1600 = vsel %vm1599, %v1592, %v1596
        %v1601 = vand.u32 2147483647, %v1591
        %vm1602 = vcmp.eq.f32.partialorder %v1601, 8.507059e+37
        %v1603 = vand.u32 %v1591, 2147483648
        %v1604 = vor.u32 1.1754944e-38, %v1603
        %v1605 = vsel %vm1602, %v1604, %v1600
        %v1606 = vmul.f32 1.0, %v1605
        %v1607 = vtanh.pop %v1587
        %v1608 = vmul.f32 %v1606, %v1484
        %1610 = vrot.lane.b32.xlu0 %v1607, 32
        %v1611 = vpop.permute.xlu0 %1610
        %v1613 = vmul.f32 %v1606, %v1611
        %1615 = vrot.lane.b32.xlu0 %v1613, 32
        %v1616 = vpop.permute.xlu0 %1615
        %v1618 = vadd.f32 %v1608, %v1616
        %v1619 = vtanh.pop %v1618
        %1621 = vrot.lane.b32.xlu0 %v1619, 32
        %v1622 = vpop.permute.xlu0 %1621
        %v1624 = vmul.f32 %v1606, %v1622
        %v1625 = vpack.c.bf16 %v1624, %v1624
        %1627 = vrot.lane.b32.xlu0 %v1625, 64
        %v1628 = vpop.permute.xlu0 %1627
        %v1630 = vsel %vm546, %v1628, 0
        %1632 = vmatpush.bf16.msra.mxu0 0
        %1633 = vmatpush.bf16.msra.mxu0 0
        %1634 = vmatpush.bf16.msra.mxu0 0
        %1635 = vmatpush.bf16.msra.mxu0 0
        %1636 = vmatpush.bf16.msra.mxu0 0
        %1637 = vmatpush.bf16.msra.mxu0 0
        %1638 = vmatpush.bf16.msra.mxu0 %v683
        %1639 = vmatpush.bf16.msra.mxu0 %v682
        %1640 = vmatmul.bf16.gmra.mxu0 %v1630
        %v1641 = vpop.f32.mrf.mxu0
        %v1642 = vadd.f32 %v602, %v1641
        %v1643 = vpop.f32.mrf.mxu0
        %1644 = vdwg.mxu0
        %v1645 = vpack.c.bf16 %v1568, %v1568
        %1647 = vrot.lane.b32.xlu0 %v1645, 64
        %v1648 = vpop.permute.xlu0 %1647
        %v1650 = vsel %vm546, %v1648, 0
        %1652 = vmatpush.bf16.msra.mxu0 0
        %1653 = vmatpush.bf16.msra.mxu0 0
        %1654 = vmatpush.bf16.msra.mxu0 0
        %1655 = vmatpush.bf16.msra.mxu0 0
        %1656 = vmatpush.bf16.msra.mxu0 0
        %1657 = vmatpush.bf16.msra.mxu0 0
        %1658 = vmatpush.bf16.msra.mxu0 %v711
        %1659 = vmatpush.bf16.msra.mxu0 %v710
        %1660 = vmatmul.bf16.gmra.mxu0 %v1650
        %v1661 = vpop.f32.mrf.mxu0
        %v1662 = vadd.f32 0.0, %v1661
        %v1663 = vpop.f32.mrf.mxu0
        %1664 = vdwg.mxu0
        %v1665 = vadd.f32 %v1642, %v1662
        %v1666 = vxor.u32 %v1665, 2147483648
        %v1667 = vmul.f32 %v1666, 1.442695
        %v1668 = vpow.pop %v1667
        %v1669 = vadd.f32 %v1668, 1.0
        %v1670 = vrcp.pop %v1669
        %v1671 = vmul.f32 %v1669, %v1670
        %v1672 = vsub.f32 1.0, %v1671
        %v1673 = vmul.f32 %v1670, %v1672
        %v1674 = vadd.f32 %v1670, %v1673
        %vm1675 = vweird.f32 %v1669
        %vm1676 = vweird.f32 %v1670
        %vm1677 = vmor %vm1675, %vm1676
        %v1678 = vsel %vm1677, %v1670, %v1674
        %v1679 = vand.u32 2147483647, %v1669
        %vm1680 = vcmp.eq.f32.partialorder %v1679, 8.507059e+37
        %v1681 = vand.u32 %v1669, 2147483648
        %v1682 = vor.u32 1.1754944e-38, %v1681
        %v1683 = vsel %vm1680, %v1682, %v1678
        %v1684 = vmul.f32 1.0, %v1683
        %v1685 = vtanh.pop %v1665
        %v1686 = vmul.f32 %v1684, %v1562
        %1688 = vrot.lane.b32.xlu0 %v1685, 32
        %v1689 = vpop.permute.xlu0 %1688
        %v1691 = vmul.f32 %v1684, %v1689
        %1693 = vrot.lane.b32.xlu0 %v1691, 32
        %v1694 = vpop.permute.xlu0 %1693
        %v1696 = vadd.f32 %v1686, %v1694
        %v1697 = vtanh.pop %v1696
        %1699 = vrot.lane.b32.xlu0 %v1697, 32
        %v1700 = vpop.permute.xlu0 %1699
        %v1702 = vmul.f32 %v1684, %v1700
        %1704 = vrot.lane.b32.xlu0 %v1702, 64
        %v1705 = vpop.permute.xlu0 %1704
        %1707 = vst.msk [vmem:[#allocation2 + $0x38] sm:$0xff] %vm546, %v1705
        %v1708 = vld [vmem:[#allocation2] sm:$0xff]
        %v1709 = vld [vmem:[#allocation2 + $0x8] sm:$0xff]
        %v1710 = vld [vmem:[#allocation2 + $0x10] sm:$0xff]
        %v1711 = vld [vmem:[#allocation2 + $0x18] sm:$0xff]
        %v1712 = vld [vmem:[#allocation2 + $0x20] sm:$0xff]
        %v1713 = vld [vmem:[#allocation2 + $0x28] sm:$0xff]
        %v1714 = vld [vmem:[#allocation2 + $0x30] sm:$0xff]
        %v1715 = vld [vmem:[#allocation2 + $0x38] sm:$0xff]
        %v1716 = vpack.c.bf16 %v1709, %v1708
        %v1717 = vpack.c.bf16 %v1711, %v1710
        %v1718 = vpack.c.bf16 %v1713, %v1712
        %v1719 = vpack.c.bf16 %v1715, %v1714
        %v1720 = vld [vmem:[%s9] sm:$0xf]
        %v1721 = vld [vmem:[%s9 + $0x4] sm:$0xf]
        %v1722 = vld [vmem:[%s9 + $0x8] sm:$0xf]
        %v1723 = vld [vmem:[%s9 + $0xc] sm:$0xf]
        %v1724 = vld [vmem:[%s10] sm:$0x1]
        %v1726 = vperm.slane %v1724, 0
        %v1732 = vunpack.c.l.b16 %v1720
        %v1733 = vunpack.c.l.b16 %v1721
        %v1734 = vunpack.c.l.b16 %v1722
        %v1735 = vunpack.c.l.b16 %v1723
        %v1736 = vpack.c.b16 %v1733, %v1732
        %v1737 = vpack.c.b16 %v1735, %v1734
        %v1741 = vsel %vm546, %v1716, 0
        %v1744 = vsel %vm546, %v1717, 0
        %v1747 = vsel %vm546, %v1718, 0
        %v1750 = vsel %vm546, %v1719, 0
        %1752 = vmatpush.bf16.msra.mxu0 0
        %1753 = vmatpush.bf16.msra.mxu0 0
        %1754 = vmatpush.bf16.msra.mxu0 0
        %1755 = vmatpush.bf16.msra.mxu0 0
        %1756 = vmatpush.bf16.msra.mxu0 0
        %1757 = vmatpush.bf16.msra.mxu0 0
        %1758 = vmatpush.bf16.msra.mxu0 %v1737
        %1759 = vmatpush.bf16.msra.mxu0 %v1736
        %1760 = vmatmul.bf16.gmra.mxu0 %v1741
        %v1761 = vpop.f32.mrf.mxu0
        %v1762 = vadd.f32 %v1726, %v1761
        %v1763 = vpop.f32.mrf.mxu0
        %v1764 = vadd.f32 %v1726, %v1763
        %1765 = vmatmul.bf16.gmra.mxu0 %v1744
        %v1766 = vpop.f32.mrf.mxu0
        %v1767 = vadd.f32 %v1726, %v1766
        %v1768 = vpop.f32.mrf.mxu0
        %v1769 = vadd.f32 %v1726, %v1768
        %1770 = vmatmul.bf16.gmra.mxu0 %v1747
        %v1771 = vpop.f32.mrf.mxu0
        %v1772 = vadd.f32 %v1726, %v1771
        %v1773 = vpop.f32.mrf.mxu0
        %v1774 = vadd.f32 %v1726, %v1773
        %1775 = vmatmul.bf16.gmra.mxu0 %v1750
        %v1776 = vpop.f32.mrf.mxu0
        %v1777 = vadd.f32 %v1726, %v1776
        %v1778 = vpop.f32.mrf.mxu0
        %v1779 = vadd.f32 %v1726, %v1778
        %1780 = vdwg.mxu0
        %1781 = vst [vmem:[%s380] sm:$0xff] %v1762
        %1782 = vst [vmem:[%s380 + $0x8] sm:$0xff] %v1764
        %1783 = vst [vmem:[%s380 + $0x10] sm:$0xff] %v1767
        %1784 = vst [vmem:[%s380 + $0x18] sm:$0xff] %v1769
        %1785 = vst [vmem:[%s380 + $0x20] sm:$0xff] %v1772
        %1786 = vst [vmem:[%s380 + $0x28] sm:$0xff] %v1774
        %1787 = vst [vmem:[%s380 + $0x30] sm:$0xff] %v1777
        %1788 = vst [vmem:[%s380 + $0x38] sm:$0xff] %v1779
        %s1789 = sand.u32 %s269, 1
        %s1790 = scalar_lea.sflag [#allocation4], %s1789
        %s1791 = sand.u32 %s269, 1
        %s1792 = smul.addr %s1791, 64
        %s1793 = scalar_lea.vmem [#allocation3], %s1792
        // Predicated region
        $region65: #{tpu_custom_call.1} parent=63 // pred_check
          %p1794 = pneg %p279
        $region66: #{tpu_custom_call.1} parent=63 // pred_check_branch
          %1796 = sbr.rel (%p1794) target = $region68
        $region67: #{tpu_custom_call.1} parent=63 // pred_region
          %s1797 = smul.u32 8, %s25
          %1799 = vsyncadd %s1790, 0
          %s1800 = smul.addr %s1797, 8
          %s1801 = scalar_lea.hbm %s11, %s1800
          %s1802 = sshll.u32 %s1793, 4
          %s1803 = int_to_ptr.vmem [resolvable:$true] %s1802
          %s1804 = sshll.u32 %s1801, 4
          %s1805 = int_to_ptr.hbm [resolvable:$true] %s1804
          %1810 = dma.vmem_to_hbm [thread:$0]  %s1803, 1024, %s1805, %s1790, 128, 128, 8
        $region68: #{tpu_custom_call.1} parent=63 // pred_fallthru
          _
      $region64: #{tpu_custom_call.1} parent=5 // pred_fallthru
        _
      %p1811 = scmp.le.s32.totalorder 2, %s20
      // Predicated region
      $region69: #{tpu_custom_call.1} parent=5 // pred_check
        %p1812 = pneg %p1811
      $region70: #{tpu_custom_call.1} parent=5 // pred_check_branch
        %1814 = sbr.rel (%p1812) target = $region72
      $region71: #{tpu_custom_call.1} parent=5 // pred_region
        %s1815 = ssub.s32 %s20, 2
        // Predicated region
        $region73: #{tpu_custom_call.1} parent=71 // pred_check
          %p1816 = pneg %p285
        $region74: #{tpu_custom_call.1} parent=71 // pred_check_branch
          %1818 = sbr.rel (%p1816) target = $region76
        $region75: #{tpu_custom_call.1} parent=71 // pred_region
          %s1819 = sand.u32 %s270, 1
          %s1820 = scalar_lea.sflag [#allocation4], %s1819
          %s1821 = sand.u32 %s270, 1
          %s1822 = smul.addr %s1821, 64
          %s1823 = scalar_lea.vmem [#allocation3], %s1822
          %1825 = dma.done %s1820, 1024
        $region76: #{tpu_custom_call.1} parent=71 // pred_fallthru
          _
      $region72: #{tpu_custom_call.1} parent=5 // pred_fallthru
        _
    $region6: #{tpu_custom_call.1} parent=1 // loop_footer
      %s24 = sadd.s32 1, %s20
    $region7: #{tpu_custom_call.1} parent=1 // loop_footer_branch
      %19 = sbr.rel target = $region3
    $region8: #{tpu_custom_call.1} parent=1 // loop_exit
      _
    %1826 = vsyncpa [#allocation4], 1
    %s1827 = scalar_lea.sflag [#allocation4], 1
    %1828 = vsyncpa %s1827, 1

</llo_original>
